<compile_context>
chip_gen: v7x
topology: tpu7x:2x2x1
jax: 0.10.0
libtpu: 0.0.40
codegen_flags: <defaults>
</compile_context>

<pallas_src>
import functools

import jax
import jax.numpy as jnp
from jax.experimental import pallas as pl
from jax.experimental.pallas import tpu as pltpu


def residual_ff_kernel(x_ref, w1_ref, b1_ref, w2_ref, b2_ref, o_ref):
    """o = gelu(x @ W1 + b1) @ W2 + b2 + x for one (tm, D) row tile."""
    x = x_ref[...]                                   # (tm, D), input dtype (f32)
    x_mx = x.astype(jnp.bfloat16)                    # MXU-rate dtype
    # First matmul: (tm, D) @ (D, H) -> f32 accumulation.
    h = jnp.dot(x_mx, w1_ref[...], preferred_element_type=jnp.float32)
    h = h + b1_ref[...]                              # broadcast (1, H), f32
    h = jax.nn.gelu(h, approximate=True)             # tanh GELU -> EUP slot
    # Second matmul: (tm, H) @ (H, D) -> f32 accumulation.
    y = jnp.dot(h.astype(jnp.bfloat16), w2_ref[...],
                preferred_element_type=jnp.float32)
    y = y + b2_ref[...]                              # broadcast (1, D), f32
    # Residual add in f32, then cast. Lane-dense store (D multiple of 128).
    o_ref[...] = (y + x.astype(jnp.float32)).astype(o_ref.dtype)


def _round_up(v, m):
    return ((v + m - 1) // m) * m


def _pick_tm(rows):
    """Row-tile: as large as 1024, multiple of 256, but keep >=2 grid steps so the
    'parallel' axis can shard across v7x's two TensorCores. Tiny inputs get a single
    sublane-aligned tile."""
    if rows <= 256:
        return min(256, _round_up(rows, 8))
    for tm in (1024, 512, 256):
        if pl.cdiv(rows, tm) >= 2:
            return tm
    return 256


@jax.jit
def residual_forward(x, w1_bf16, b1_f32, w2_bf16, b2_f32):
    """x: (B, N, D) -> (B, N, D), computing fn(x) + x with fn = FeedForward.

    Weights are expected pre-cast (bf16 matmul operands, f32 biases) — done once at
    init by `init_ff_params`, not per call.
    """
    B, N, D = x.shape
    H = w1_bf16.shape[1]
    rows = B * N
    tm = _pick_tm(rows)
    grid = (pl.cdiv(rows, tm),)

    x2d = x.reshape(rows, D)   # free metadata reshape under jit

    fn = pl.pallas_call(
        residual_ff_kernel,
        out_shape=jax.ShapeDtypeStruct((rows, D), x.dtype),
        grid_spec=pltpu.PrefetchScalarGridSpec(
            num_scalar_prefetch=0,
            grid=grid,
            in_specs=[
                pl.BlockSpec((tm, D), lambda i: (i, 0)),   # x row tile
                pl.BlockSpec((D, H), lambda i: (0, 0)),    # W1 (resident, const idx)
                pl.BlockSpec((1, H), lambda i: (0, 0)),    # b1
                pl.BlockSpec((H, D), lambda i: (0, 0)),    # W2 (resident, const idx)
                pl.BlockSpec((1, D), lambda i: (0, 0)),    # b2
            ],
            out_specs=pl.BlockSpec((tm, D), lambda i: (i, 0)),
        ),
        compiler_params=pltpu.CompilerParams(
            dimension_semantics=("parallel",),             # megacore-shardable rows
            vmem_limit_bytes=48 * 1024 * 1024,
        ),
    )
    out = fn(x2d, w1_bf16, b1_f32, w2_bf16, b2_f32)
    return out.reshape(B, N, D)


def init_ff_params(w1, b1, w2, b2):
    """One-time cast of FeedForward parameters (mimics module init): bf16 matmul
    operands (halves weight VMEM residency + HBM DMA bytes), f32 biases (added after
    the f32 accumulation)."""
    return (jnp.asarray(w1, jnp.bfloat16), jnp.asarray(b1, jnp.float32),
            jnp.asarray(w2, jnp.bfloat16), jnp.asarray(b2, jnp.float32))


def reference_forward(x, w1, b1, w2, b2):
    h = jax.nn.gelu(x @ w1 + b1[0], approximate=True)
    return h @ w2 + b2[0] + x


if __name__ == "__main__":
    # Small but lane-dense shapes: D and H are multiples of 128. rows = B*N = 300,
    # deliberately NOT a multiple of the 256-row tile, so the run exercises both a
    # 2-step grid (v7x megacore path) and the masked ragged last tile.
    B, N, D, H = 3, 100, 128, 256

    key = jax.random.PRNGKey(0)
    kx, k1, k2, k3, k4 = jax.random.split(key, 5)

    x = jax.random.normal(kx, (B, N, D), dtype=jnp.float32)
    # Deterministic synthetic parameters (not a checkpoint).
    w1 = jax.random.normal(k1, (D, H), dtype=jnp.float32) * 0.05
    b1 = jax.random.normal(k2, (1, H), dtype=jnp.float32) * 0.01
    w2 = jax.random.normal(k3, (H, D), dtype=jnp.float32) * 0.05
    b2 = jax.random.normal(k4, (1, D), dtype=jnp.float32) * 0.01

    # One-time parameter prep (module init), outside the per-call forward path.
    params = init_ff_params(w1, b1, w2, b2)

    out = residual_forward(x, *params)
    out = jax.block_until_ready(out)

    ref = reference_forward(x, w1, b1, w2, b2)
    assert out.shape == x.shape
    # Tolerance accounts for bf16 matmul operands (f32 accumulation / f32 residual).
    assert jnp.allclose(out, ref, atol=3e-2, rtol=3e-2), "mismatch vs reference"

    print("KERNEL_OK")
</pallas_src>

<mosaic_0001>
module attributes {stable_mosaic.version = 11 : i64} {
  func.func @residual_ff_kernel(%arg0: i32, %arg1: memref<256x128xf32, #tpu.memory_space<vmem>>, %arg2: memref<128x256xbf16, #tpu.memory_space<vmem>>, %arg3: memref<1x256xf32, #tpu.memory_space<vmem>>, %arg4: memref<256x128xbf16, #tpu.memory_space<vmem>>, %arg5: memref<1x128xf32, #tpu.memory_space<vmem>>, %arg6: memref<256x128xf32, #tpu.memory_space<vmem>>) attributes {dimension_semantics = [#tpu.dimension_semantics<parallel>], iteration_bounds = array<i64: 2>, scalar_prefetch = 0 : i64, scratch_operands = 0 : i64, tpu.core_type = #tpu.core_type<tc>, window_params = [{transform_indices = @transform_0, window_bounds = array<i64: 256, 128>}, {pipeline_mode = #tpu.pipeline_mode<synchronous>, transform_indices = @transform_1, window_bounds = array<i64: 128, 256>}, {pipeline_mode = #tpu.pipeline_mode<synchronous>, transform_indices = @transform_2, window_bounds = array<i64: 1, 256>}, {pipeline_mode = #tpu.pipeline_mode<synchronous>, transform_indices = @transform_3, window_bounds = array<i64: 256, 128>}, {pipeline_mode = #tpu.pipeline_mode<synchronous>, transform_indices = @transform_4, window_bounds = array<i64: 1, 128>}, {transform_indices = @transform_5, window_bounds = array<i64: 256, 128>}]} {
    %c0 = arith.constant 0 : index
    %c0_0 = arith.constant 0 : index
    %0 = vector.load %arg1[%c0, %c0_0] : memref<256x128xf32, #tpu.memory_space<vmem>>, vector<256x128xf32>
    %1 = arith.truncf %0 : vector<256x128xf32> to vector<256x128xbf16>
    %c0_1 = arith.constant 0 : index
    %c0_2 = arith.constant 0 : index
    %2 = vector.load %arg2[%c0_1, %c0_2] : memref<128x256xbf16, #tpu.memory_space<vmem>>, vector<128x256xbf16>
    %cst = arith.constant dense<0.000000e+00> : vector<256x256xf32>
    %3 = tpu.matmul %1, %2, %cst {dimension_numbers = #tpu.dot_dimension_numbers<[1], [0], [0], [1], [0, 0, 1, 1], [], []>} : vector<256x128xbf16>, vector<128x256xbf16>, vector<256x256xf32> -> vector<256x256xf32>
    %c0_3 = arith.constant 0 : index
    %c0_4 = arith.constant 0 : index
    %4 = vector.load %arg3[%c0_3, %c0_4] : memref<1x256xf32, #tpu.memory_space<vmem>>, vector<1x256xf32>
    %5 = vector.broadcast %4 : vector<1x256xf32> to vector<256x256xf32>
    %6 = arith.addf %3, %5 : vector<256x256xf32>
    %7 = arith.mulf %6, %6 : vector<256x256xf32>
    %8 = arith.mulf %6, %7 : vector<256x256xf32>
    %cst_5 = arith.constant 4.471500e-02 : f32
    %9 = vector.broadcast %cst_5 : f32 to vector<256x256xf32>
    %10 = arith.mulf %9, %8 : vector<256x256xf32>
    %11 = arith.addf %6, %10 : vector<256x256xf32>
    %cst_6 = arith.constant 0.797884583 : f32
    %12 = vector.broadcast %cst_6 : f32 to vector<256x256xf32>
    %13 = arith.mulf %12, %11 : vector<256x256xf32>
    %14 = math.tanh %13 : vector<256x256xf32>
    %cst_7 = arith.constant 1.000000e+00 : f32
    %15 = vector.broadcast %cst_7 : f32 to vector<256x256xf32>
    %16 = arith.addf %15, %14 : vector<256x256xf32>
    %cst_8 = arith.constant 5.000000e-01 : f32
    %17 = vector.broadcast %cst_8 : f32 to vector<256x256xf32>
    %18 = arith.mulf %17, %16 : vector<256x256xf32>
    %19 = arith.mulf %6, %18 : vector<256x256xf32>
    %20 = arith.truncf %19 : vector<256x256xf32> to vector<256x256xbf16>
    %c0_9 = arith.constant 0 : index
    %c0_10 = arith.constant 0 : index
    %21 = vector.load %arg4[%c0_9, %c0_10] : memref<256x128xbf16, #tpu.memory_space<vmem>>, vector<256x128xbf16>
    %cst_11 = arith.constant dense<0.000000e+00> : vector<256x128xf32>
    %22 = tpu.matmul %20, %21, %cst_11 {dimension_numbers = #tpu.dot_dimension_numbers<[1], [0], [0], [1], [0, 0, 1, 1], [], []>} : vector<256x256xbf16>, vector<256x128xbf16>, vector<256x128xf32> -> vector<256x128xf32>
    %c0_12 = arith.constant 0 : index
    %c0_13 = arith.constant 0 : index
    %23 = vector.load %arg5[%c0_12, %c0_13] : memref<1x128xf32, #tpu.memory_space<vmem>>, vector<1x128xf32>
    %24 = vector.broadcast %23 : vector<1x128xf32> to vector<256x128xf32>
    %25 = arith.addf %22, %24 : vector<256x128xf32>
    %26 = arith.addf %25, %0 : vector<256x128xf32>
    %c0_14 = arith.constant 0 : index
    %c0_15 = arith.constant 0 : index
    %27 = vector.load %arg6[%c0_14, %c0_15] : memref<256x128xf32, #tpu.memory_space<vmem>>, vector<256x128xf32>
    tpu.vector_store %arg6[%c0_14, %c0_15], %26 {strides = array<i32>} : memref<256x128xf32, #tpu.memory_space<vmem>>, vector<256x128xf32>,
    return
  }
  func.func @transform_0(%arg0: i32) -> (i32, i32) {
    %c0_i32 = arith.constant 0 : i32
    %c0_i32_0 = arith.constant 0 : i32
    return %arg0, %c0_i32 : i32, i32
  }
  func.func @transform_1(%arg0: i32) -> (i32, i32) {
    %c0_i32 = arith.constant 0 : i32
    %c0_i32_0 = arith.constant 0 : i32
    %c0_i32_1 = arith.constant 0 : i32
    return %c0_i32, %c0_i32_0 : i32, i32
  }
  func.func @transform_2(%arg0: i32) -> (i32, i32) {
    %c0_i32 = arith.constant 0 : i32
    %c0_i32_0 = arith.constant 0 : i32
    %c0_i32_1 = arith.constant 0 : i32
    return %c0_i32, %c0_i32_0 : i32, i32
  }
  func.func @transform_3(%arg0: i32) -> (i32, i32) {
    %c0_i32 = arith.constant 0 : i32
    %c0_i32_0 = arith.constant 0 : i32
    %c0_i32_1 = arith.constant 0 : i32
    return %c0_i32, %c0_i32_0 : i32, i32
  }
  func.func @transform_4(%arg0: i32) -> (i32, i32) {
    %c0_i32 = arith.constant 0 : i32
    %c0_i32_0 = arith.constant 0 : i32
    %c0_i32_1 = arith.constant 0 : i32
    return %c0_i32, %c0_i32_0 : i32, i32
  }
  func.func @transform_5(%arg0: i32) -> (i32, i32) {
    %c0_i32 = arith.constant 0 : i32
    %c0_i32_0 = arith.constant 0 : i32
    return %arg0, %c0_i32 : i32, i32
  }
}

</mosaic_0001>

<llo_original>
// kernel: residual_forward.1
$region0: #{residual_forward.1}
  #allocation0 [shape = 'u32[]', space=smem, size = 0x4, offset = 0x4, fixed_abs, tag = 'smem constant byte address 0x4 - core index']
  #allocation1 [shape = 'u32[144,128]{1,0:T(1,128)}', space=vmem, size = 0x12000, scoped, tag = 'internal scratch']
  %s0 = inlined_call_operand.vmem [shape: f32[300,128], index: 0, kind: input, shape index: {}]
  %s1 = inlined_call_operand.vmem [shape: bf16[128,256], index: 1, kind: input, shape index: {}]
  %s2 = inlined_call_operand.vmem [shape: f32[1,256], index: 2, kind: input, shape index: {}]
  %s3 = inlined_call_operand.vmem [shape: bf16[256,128], index: 3, kind: input, shape index: {}]
  %s4 = inlined_call_operand.vmem [shape: f32[1,128], index: 4, kind: input, shape index: {}]
  %s5 = inlined_call_operand.vmem [shape: f32[300,128], index: 5, kind: output, shape index: {}]
  %s6 = sld [smem:[#allocation0]]
  $region101: #{residual_forward.1} parent=0
    _
  %s8 = ssub.s32 1, %s6
  %s9 = scalar_select 0, %s8, %s6
  $region1: #{residual_forward.1} parent=0
    #allocation2 [shape = 'u8[262144]{0}', space=vmem, size = 0x40000, scoped, tag = 'output window, operand 0']
    loop: start=0, step=1, limit=4
    $region2: #{residual_forward.1} parent=1 // loop_pre_header
      _
    $region3: #{residual_forward.1} parent=1 // loop_header
      %s11 = sphi 0, %s15
      %p12 = scmp.ge.s32.totalorder %s11, 4
      %s21 = sphi 0, %s23
      %s24 = sphi 0, %s21
      %s25 = sphi 0, %s24
      %s41 = sphi 0, %s25
      %s45 = sphi 0, %s45
      %s47 = sphi 0, %s45
      %s48 = sphi 0, %s47
      %s62 = sphi 0, %s48
      %s66 = sphi 0, %s66
      %s68 = sphi 0, %s66
      %s69 = sphi 0, %s68
      %s83 = sphi 0, %s69
      %s87 = sphi 0, %s87
      %s89 = sphi 0, %s87
      %s90 = sphi 0, %s89
      %s104 = sphi 0, %s90
      %s108 = sphi 0, %s108
      %s110 = sphi 0, %s108
      %s111 = sphi 0, %s110
      %s125 = sphi 0, %s111
      %s131 = sphi 0, %s133
      %s134 = sphi 0, %s131
      %s135 = sphi 0, %s134
      %s151 = sphi 0, %s135
    $region4: #{residual_forward.1} parent=1 // loop_header_branch
      %14 = sbr.rel (%p12) target = $region8
    $region5: #{residual_forward.1} parent=1 // loop_body
      %s16 = ssub.s32 %s11, 1
      %s17 = ssub.s32 %s11, 2
      %s18 = sadd.s32 %s11, 1
      %s19 = ssub.s32 %s11, %s18
      %p20 = scmp.eq.s32.totalorder %s19, 0
      %s22 = sadd.s32 %s21, 1
      %s23 = scalar_select %p20, %s21, %s22
      %p26 = pneg %p20
      %p27 = scmp.eq.s32.totalorder %s11, 1
      %p28 = por %p26, %p27
      %p29 = scmp.ne.s32.totalorder %s21, %s24
      %p30 = scmp.eq.s32.totalorder %s11, 0
      %p31 = por %p29, %p30
      %p32 = scmp.ne.s32.totalorder %s21, %s24
      %p33 = scmp.eq.s32.totalorder %s16, 1
      %p34 = por %p32, %p33
      %p35 = scmp.ne.s32.totalorder %s24, %s25
      %p36 = scmp.eq.s32.totalorder %s16, 0
      %p37 = por %p35, %p36
      %p38 = scmp.ne.s32.totalorder %s24, %s25
      %p39 = scmp.eq.s32.totalorder %s17, 1
      %p40 = por %p38, %p39
      %p42 = scmp.ne.s32.totalorder %s25, %s41
      %p43 = scmp.eq.s32.totalorder %s17, 0
      %p44 = por %p42, %p43
      %s46 = sadd.s32 %s45, 1
      %p49 = scmp.eq.s32.totalorder %s11, 1
      %p50 = scmp.ne.s32.totalorder %s45, %s47
      %p51 = scmp.eq.s32.totalorder %s11, 0
      %p52 = por %p50, %p51
      %p53 = scmp.ne.s32.totalorder %s45, %s47
      %p54 = scmp.eq.s32.totalorder %s16, 1
      %p55 = por %p53, %p54
      %p56 = scmp.ne.s32.totalorder %s47, %s48
      %p57 = scmp.eq.s32.totalorder %s16, 0
      %p58 = por %p56, %p57
      %p59 = scmp.ne.s32.totalorder %s47, %s48
      %p60 = scmp.eq.s32.totalorder %s17, 1
      %p61 = por %p59, %p60
      %p63 = scmp.ne.s32.totalorder %s48, %s62
      %p64 = scmp.eq.s32.totalorder %s17, 0
      %p65 = por %p63, %p64
      %s67 = sadd.s32 %s66, 1
      %p70 = scmp.eq.s32.totalorder %s11, 1
      %p71 = scmp.ne.s32.totalorder %s66, %s68
      %p72 = scmp.eq.s32.totalorder %s11, 0
      %p73 = por %p71, %p72
      %p74 = scmp.ne.s32.totalorder %s66, %s68
      %p75 = scmp.eq.s32.totalorder %s16, 1
      %p76 = por %p74, %p75
      %p77 = scmp.ne.s32.totalorder %s68, %s69
      %p78 = scmp.eq.s32.totalorder %s16, 0
      %p79 = por %p77, %p78
      %p80 = scmp.ne.s32.totalorder %s68, %s69
      %p81 = scmp.eq.s32.totalorder %s17, 1
      %p82 = por %p80, %p81
      %p84 = scmp.ne.s32.totalorder %s69, %s83
      %p85 = scmp.eq.s32.totalorder %s17, 0
      %p86 = por %p84, %p85
      %s88 = sadd.s32 %s87, 1
      %p91 = scmp.eq.s32.totalorder %s11, 1
      %p92 = scmp.ne.s32.totalorder %s87, %s89
      %p93 = scmp.eq.s32.totalorder %s11, 0
      %p94 = por %p92, %p93
      %p95 = scmp.ne.s32.totalorder %s87, %s89
      %p96 = scmp.eq.s32.totalorder %s16, 1
      %p97 = por %p95, %p96
      %p98 = scmp.ne.s32.totalorder %s89, %s90
      %p99 = scmp.eq.s32.totalorder %s16, 0
      %p100 = por %p98, %p99
      %p101 = scmp.ne.s32.totalorder %s89, %s90
      %p102 = scmp.eq.s32.totalorder %s17, 1
      %p103 = por %p101, %p102
      %p105 = scmp.ne.s32.totalorder %s90, %s104
      %p106 = scmp.eq.s32.totalorder %s17, 0
      %p107 = por %p105, %p106
      %s109 = sadd.s32 %s108, 1
      %p112 = scmp.eq.s32.totalorder %s11, 1
      %p113 = scmp.ne.s32.totalorder %s108, %s110
      %p114 = scmp.eq.s32.totalorder %s11, 0
      %p115 = por %p113, %p114
      %p116 = scmp.ne.s32.totalorder %s108, %s110
      %p117 = scmp.eq.s32.totalorder %s16, 1
      %p118 = por %p116, %p117
      %p119 = scmp.ne.s32.totalorder %s110, %s111
      %p120 = scmp.eq.s32.totalorder %s16, 0
      %p121 = por %p119, %p120
      %p122 = scmp.ne.s32.totalorder %s110, %s111
      %p123 = scmp.eq.s32.totalorder %s17, 1
      %p124 = por %p122, %p123
      %p126 = scmp.ne.s32.totalorder %s111, %s125
      %p127 = scmp.eq.s32.totalorder %s17, 0
      %p128 = por %p126, %p127
      %s129 = ssub.s32 %s11, %s18
      %p130 = scmp.eq.s32.totalorder %s129, 0
      %s132 = sadd.s32 %s131, 1
      %s133 = scalar_select %p130, %s131, %s132
      %p136 = pneg %p130
      %p137 = scmp.eq.s32.totalorder %s11, 1
      %p138 = por %p136, %p137
      %p139 = scmp.ne.s32.totalorder %s131, %s134
      %p140 = scmp.eq.s32.totalorder %s11, 0
      %p141 = por %p139, %p140
      %p142 = scmp.ne.s32.totalorder %s131, %s134
      %p143 = scmp.eq.s32.totalorder %s16, 1
      %p144 = por %p142, %p143
      %p145 = scmp.ne.s32.totalorder %s134, %s135
      %p146 = scmp.eq.s32.totalorder %s16, 0
      %p147 = por %p145, %p146
      %p148 = scmp.ne.s32.totalorder %s134, %s135
      %p149 = scmp.eq.s32.totalorder %s17, 1
      %p150 = por %p148, %p149
      %p152 = scmp.ne.s32.totalorder %s135, %s151
      %p153 = scmp.eq.s32.totalorder %s17, 0
      %p154 = por %p152, %p153
      %p155 = scmp.le.s32.totalorder 1, %s11
      %p156 = scmp.lt.s32.totalorder %s11, 3
      %p157 = pnand %p155, %p156
      %p158 = pneg %p157
      // Predicated region
      $region9: #{residual_forward.1} parent=5 // pred_check
        _
      $region10: #{residual_forward.1} parent=5 // pred_check_branch
        %160 = sbr.rel (%p157) target = $region12
      $region11: #{residual_forward.1} parent=5 // pred_region
        %s161 = ssub.s32 %s11, 1
        // Predicated region
        $region13: #{residual_forward.1} parent=11 // pred_check
          %p162 = pneg %p58
        $region14: #{residual_forward.1} parent=11 // pred_check_branch
          %164 = sbr.rel (%p162) target = $region16
        $region15: #{residual_forward.1} parent=11 // pred_region
          _
        $region16: #{residual_forward.1} parent=11 // pred_fallthru
          _
        // Predicated region
        $region17: #{residual_forward.1} parent=11 // pred_check
          %p165 = pneg %p79
        $region18: #{residual_forward.1} parent=11 // pred_check_branch
          %167 = sbr.rel (%p165) target = $region20
        $region19: #{residual_forward.1} parent=11 // pred_region
          _
        $region20: #{residual_forward.1} parent=11 // pred_fallthru
          _
        // Predicated region
        $region21: #{residual_forward.1} parent=11 // pred_check
          %p168 = pneg %p100
        $region22: #{residual_forward.1} parent=11 // pred_check_branch
          %170 = sbr.rel (%p168) target = $region24
        $region23: #{residual_forward.1} parent=11 // pred_region
          _
        $region24: #{residual_forward.1} parent=11 // pred_fallthru
          _
        // Predicated region
        $region25: #{residual_forward.1} parent=11 // pred_check
          %p171 = pneg %p121
        $region26: #{residual_forward.1} parent=11 // pred_check_branch
          %173 = sbr.rel (%p171) target = $region28
        $region27: #{residual_forward.1} parent=11 // pred_region
          _
        $region28: #{residual_forward.1} parent=11 // pred_fallthru
          _
      $region12: #{residual_forward.1} parent=5 // pred_fallthru
        _
      %p174 = scmp.lt.s32.totalorder %s11, 2
      // Predicated region
      $region29: #{residual_forward.1} parent=5 // pred_check
        %p175 = pneg %p174
      $region30: #{residual_forward.1} parent=5 // pred_check_branch
        %177 = sbr.rel (%p175) target = $region32
      $region31: #{residual_forward.1} parent=5 // pred_region
        // Predicated region
        $region33: #{residual_forward.1} parent=31 // pred_check
          %p178 = pneg %p31
        $region34: #{residual_forward.1} parent=31 // pred_check_branch
          %180 = sbr.rel (%p178) target = $region36
        $region35: #{residual_forward.1} parent=31 // pred_region
          %s181 = smul.u32 32, %s11
          %s182 = ssub.s32 38, %s181
          %p183 = scmp.lt.s32.totalorder %s182, 32
          %s184 = scalar_select %p183, %s182, 32
          %s185 = smul.u32 128, %s184
          %p186 = scmp.lt.s32.totalorder %s181, 37
          %s187 = scalar_select %p186, %s181, 37
          %s188 = smul.addr %s187, 8
          %s189 = scalar_lea.vmem %s0, %s188
          %s190 = smul.u32 32, %s11
          %s191 = ssub.s32 38, %s190
          %p192 = scmp.lt.s32.totalorder %s191, 32
          %s193 = scalar_select %p192, %s191, 32
          %s194 = smul.u32 128, %s193
        $region36: #{residual_forward.1} parent=31 // pred_fallthru
          _
      $region32: #{residual_forward.1} parent=5 // pred_fallthru
        _
      %p195 = scmp.le.s32.totalorder 1, %s11
      %p196 = scmp.lt.s32.totalorder %s11, 3
      %p197 = pnand %p195, %p196
      %p198 = pneg %p197
      // Predicated region
      $region37: #{residual_forward.1} parent=5 // pred_check
        _
      $region38: #{residual_forward.1} parent=5 // pred_check_branch
        %200 = sbr.rel (%p197) target = $region40
      $region39: #{residual_forward.1} parent=5 // pred_region
        %s201 = ssub.s32 %s11, 1
        %s202 = smul.u32 32, %s16
        %s203 = ssub.s32 38, %s202
        %p204 = scmp.lt.s32.totalorder %s203, 32
        %s205 = scalar_select %p204, %s203, 32
        %s206 = smul.u32 128, %s205
        %p207 = scmp.lt.s32.totalorder %s202, 37
        %s208 = scalar_select %p207, %s202, 37
        %s209 = smul.addr %s208, 8
        %s210 = scalar_lea.vmem %s0, %s209
        %p211 = pneg %p37
        %p212 = pneg %p34
        %p213 = pneg %p58
        %p214 = pneg %p55
        %p215 = pneg %p79
        %p216 = pneg %p76
        %p217 = pneg %p100
        %p218 = pneg %p97
        %p219 = pneg %p121
        %p220 = pneg %p118
        %p221 = pneg %p147
        %p222 = pneg %p144
        %s223 = sand.u32 %s134, 1
        %s224 = sand.u32 %s134, 1
        %s225 = smul.addr %s224, 256
        %s226 = scalar_lea.vmem [#allocation2], %s225
        %s227 = smul.u32 32, %s16
        %s228 = ssub.s32 38, %s227
        %p229 = scmp.lt.s32.totalorder %s228, 32
        %s230 = scalar_select %p229, %s228, 32
        %s231 = smul.u32 128, %s230
        %p232 = scmp.lt.s32.totalorder %s227, 37
        %s233 = scalar_select %p232, %s227, 37
        %s234 = smul.addr %s233, 8
        %s235 = scalar_lea.vmem %s0, %s234
        %s236 = smul.u32 32, %s16
        %s237 = ssub.s32 38, %s236
        %p238 = scmp.lt.s32.totalorder %s237, 32
        %s239 = scalar_select %p238, %s237, 32
        %s240 = smul.u32 128, %s239
        %s241 = smul.u32 32, %s16
        %s242 = ssub.s32 38, %s241
        %p243 = scmp.lt.s32.totalorder %s242, 32
        %s244 = scalar_select %p243, %s242, 32
        %s245 = smul.u32 128, %s244
        %v247 = vld [vmem:[%s235] sm:$0xff]
        %v248 = vld [vmem:[%s235 + $0x8] sm:$0xff]
        %v249 = vld [vmem:[%s235 + $0x10] sm:$0xff]
        %v250 = vld [vmem:[%s235 + $0x18] sm:$0xff]
        %v251 = vld [vmem:[%s235 + $0x20] sm:$0xff]
        %v252 = vld [vmem:[%s235 + $0x28] sm:$0xff]
        %v253 = vld [vmem:[%s235 + $0x30] sm:$0xff]
        %v254 = vld [vmem:[%s235 + $0x38] sm:$0xff]
        %v255 = vld [vmem:[%s235 + $0x40] sm:$0xff]
        %v256 = vld [vmem:[%s235 + $0x48] sm:$0xff]
        %v257 = vld [vmem:[%s235 + $0x50] sm:$0xff]
        %v258 = vld [vmem:[%s235 + $0x58] sm:$0xff]
        %v259 = vld [vmem:[%s235 + $0x60] sm:$0xff]
        %v260 = vld [vmem:[%s235 + $0x68] sm:$0xff]
        %v261 = vld [vmem:[%s235 + $0x70] sm:$0xff]
        %v262 = vld [vmem:[%s235 + $0x78] sm:$0xff]
        %v263 = vld [vmem:[%s235 + $0x80] sm:$0xff]
        %v264 = vld [vmem:[%s235 + $0x88] sm:$0xff]
        %v265 = vld [vmem:[%s235 + $0x90] sm:$0xff]
        %v266 = vld [vmem:[%s235 + $0x98] sm:$0xff]
        %v267 = vld [vmem:[%s235 + $0xa0] sm:$0xff]
        %v268 = vld [vmem:[%s235 + $0xa8] sm:$0xff]
        %v269 = vld [vmem:[%s235 + $0xb0] sm:$0xff]
        %v270 = vld [vmem:[%s235 + $0xb8] sm:$0xff]
        %v271 = vld [vmem:[%s235 + $0xc0] sm:$0xff]
        %v272 = vld [vmem:[%s235 + $0xc8] sm:$0xff]
        %v273 = vld [vmem:[%s235 + $0xd0] sm:$0xff]
        %v274 = vld [vmem:[%s235 + $0xd8] sm:$0xff]
        %v275 = vld [vmem:[%s235 + $0xe0] sm:$0xff]
        %v276 = vld [vmem:[%s235 + $0xe8] sm:$0xff]
        %v277 = vld [vmem:[%s235 + $0xf0] sm:$0xff]
        %v278 = vld [vmem:[%s235 + $0xf8] sm:$0xff]
        %v279 = vpack.c.bf16 %v248, %v247
        %v280 = vpack.c.bf16 %v250, %v249
        %v281 = vpack.c.bf16 %v252, %v251
        %v282 = vpack.c.bf16 %v254, %v253
        %v283 = vpack.c.bf16 %v256, %v255
        %v284 = vpack.c.bf16 %v258, %v257
        %v285 = vpack.c.bf16 %v260, %v259
        %v286 = vpack.c.bf16 %v262, %v261
        %v287 = vpack.c.bf16 %v264, %v263
        %v288 = vpack.c.bf16 %v266, %v265
        %v289 = vpack.c.bf16 %v268, %v267
        %v290 = vpack.c.bf16 %v270, %v269
        %v291 = vpack.c.bf16 %v272, %v271
        %v292 = vpack.c.bf16 %v274, %v273
        %v293 = vpack.c.bf16 %v276, %v275
        %v294 = vpack.c.bf16 %v278, %v277
        %v295 = vld [vmem:[%s1] sm:$0xff]
        %v296 = vld [vmem:[%s1 + $0x8] sm:$0xff]
        %v297 = vld [vmem:[%s1 + $0x10] sm:$0xff]
        %v298 = vld [vmem:[%s1 + $0x18] sm:$0xff]
        %v299 = vld [vmem:[%s1 + $0x20] sm:$0xff]
        %v300 = vld [vmem:[%s1 + $0x28] sm:$0xff]
        %v301 = vld [vmem:[%s1 + $0x30] sm:$0xff]
        %v302 = vld [vmem:[%s1 + $0x38] sm:$0xff]
        %v303 = vld [vmem:[%s1 + $0x40] sm:$0xff]
        %v304 = vld [vmem:[%s1 + $0x48] sm:$0xff]
        %v305 = vld [vmem:[%s1 + $0x50] sm:$0xff]
        %v306 = vld [vmem:[%s1 + $0x58] sm:$0xff]
        %v307 = vld [vmem:[%s1 + $0x60] sm:$0xff]
        %v308 = vld [vmem:[%s1 + $0x68] sm:$0xff]
        %v309 = vld [vmem:[%s1 + $0x70] sm:$0xff]
        %v310 = vld [vmem:[%s1 + $0x78] sm:$0xff]
        %v311 = vld [vmem:[%s2] sm:$0x3]
        %v313 = vlaneseq
        %v314 = vshrl.u32 %v313, 7
        %v315 = vsub.s32 0, %v314
        %v316 = vrot.slane %v311, %v315
        %v317 = vlaneseq
        %v318 = vshrl.u32 %v317, 7
        %v319 = vsub.s32 1, %v318
        %v320 = vrot.slane %v311, %v319
        %v339 = vunpack.c.l.b16 %v295
        %v340 = vunpack.c.h.b16 %v295
        %v341 = vunpack.c.l.b16 %v296
        %v342 = vunpack.c.h.b16 %v296
        %v343 = vunpack.c.l.b16 %v297
        %v344 = vunpack.c.h.b16 %v297
        %v345 = vunpack.c.l.b16 %v298
        %v346 = vunpack.c.h.b16 %v298
        %v347 = vunpack.c.l.b16 %v299
        %v348 = vunpack.c.h.b16 %v299
        %v349 = vunpack.c.l.b16 %v300
        %v350 = vunpack.c.h.b16 %v300
        %v351 = vunpack.c.l.b16 %v301
        %v352 = vunpack.c.h.b16 %v301
        %v353 = vunpack.c.l.b16 %v302
        %v354 = vunpack.c.h.b16 %v302
        %v355 = vunpack.c.l.b16 %v303
        %v356 = vunpack.c.h.b16 %v303
        %v357 = vunpack.c.l.b16 %v304
        %v358 = vunpack.c.h.b16 %v304
        %v359 = vunpack.c.l.b16 %v305
        %v360 = vunpack.c.h.b16 %v305
        %v361 = vunpack.c.l.b16 %v306
        %v362 = vunpack.c.h.b16 %v306
        %v363 = vunpack.c.l.b16 %v307
        %v364 = vunpack.c.h.b16 %v307
        %v365 = vunpack.c.l.b16 %v308
        %v366 = vunpack.c.h.b16 %v308
        %v367 = vunpack.c.l.b16 %v309
        %v368 = vunpack.c.h.b16 %v309
        %v369 = vunpack.c.l.b16 %v310
        %v370 = vunpack.c.h.b16 %v310
        %v371 = vpack.c.b16 %v341, %v339
        %v372 = vpack.c.b16 %v342, %v340
        %v373 = vpack.c.b16 %v345, %v343
        %v374 = vpack.c.b16 %v346, %v344
        %v375 = vpack.c.b16 %v349, %v347
        %v376 = vpack.c.b16 %v350, %v348
        %v377 = vpack.c.b16 %v353, %v351
        %v378 = vpack.c.b16 %v354, %v352
        %v379 = vpack.c.b16 %v357, %v355
        %v380 = vpack.c.b16 %v358, %v356
        %v381 = vpack.c.b16 %v361, %v359
        %v382 = vpack.c.b16 %v362, %v360
        %v383 = vpack.c.b16 %v365, %v363
        %v384 = vpack.c.b16 %v366, %v364
        %v385 = vpack.c.b16 %v369, %v367
        %v386 = vpack.c.b16 %v370, %v368
        %403 = vmatprep.subr.bf16.mxu0 %v372
        %404 = vmatpush1.bf16.msra.mxu0 %v371
        %405 = vmatprep.subr.bf16.mxu0 %v374
        %406 = vmatpush1.bf16.msra.mxu0 %v373
        %407 = vmatprep.subr.bf16.mxu0 %v376
        %408 = vmatpush1.bf16.msra.mxu0 %v375
        %409 = vmatprep.subr.bf16.mxu0 %v378
        %410 = vmatpush1.bf16.msra.mxu0 %v377
        %411 = vmatprep.subr.bf16.mxu0 %v380
        %412 = vmatpush1.bf16.msra.mxu0 %v379
        %413 = vmatprep.subr.bf16.mxu0 %v382
        %414 = vmatpush1.bf16.msra.mxu0 %v381
        %415 = vmatprep.subr.bf16.mxu0 %v384
        %416 = vmatpush1.bf16.msra.mxu0 %v383
        %417 = vmatprep.subr.bf16.mxu0 %v386
        %418 = vmatpush1.bf16.msra.mxu0 %v385
        %419 = vmatprep.subr.bf16.mxu0 0
        %420 = vmatpush1.bf16.msra.mxu0 0
        %421 = vmatprep.subr.bf16.mxu0 0
        %422 = vmatpush1.bf16.msra.mxu0 0
        %423 = vmatprep.subr.bf16.mxu0 0
        %424 = vmatpush1.bf16.msra.mxu0 0
        %425 = vmatprep.subr.bf16.mxu0 0
        %426 = vmatpush1.bf16.msra.mxu0 0
        %427 = vmatprep.subr.bf16.mxu0 0
        %428 = vmatpush1.bf16.msra.mxu0 0
        %429 = vmatprep.subr.bf16.mxu0 0
        %430 = vmatpush1.bf16.msra.mxu0 0
        %431 = vmatprep.subr.bf16.mxu0 0
        %432 = vmatpush1.bf16.msra.mxu0 0
        %433 = vmatprep.subr.bf16.mxu0 0
        %434 = vmatpush1.bf16.msra.mxu0 0
        %435 = vmatprep.mubr.bf16.mxu0 0
        %436 = vmatmul.mubr.bf16.gmra.mrb[0].mxu0 %v279
        %v437 = vpop.f32.mrb[0].mxu0
        %v438 = vadd.f32 %v316, %v437
        %v439 = vpop.f32.mrb[0].mxu0
        %v440 = vadd.f32 %v320, %v439
        %v441 = vpop.f32.mrb[0].mxu0
        %v442 = vadd.f32 %v316, %v441
        %v443 = vpop.f32.mrb[0].mxu0
        %v444 = vadd.f32 %v320, %v443
        %445 = vmatprep.mubr.bf16.mxu0 0
        %446 = vmatmul.mubr.bf16.gmra.mrb[0].mxu0 %v280
        %v447 = vpop.f32.mrb[0].mxu0
        %v448 = vadd.f32 %v316, %v447
        %v449 = vpop.f32.mrb[0].mxu0
        %v450 = vadd.f32 %v320, %v449
        %v451 = vpop.f32.mrb[0].mxu0
        %v452 = vadd.f32 %v316, %v451
        %v453 = vpop.f32.mrb[0].mxu0
        %v454 = vadd.f32 %v320, %v453
        %455 = vmatprep.mubr.bf16.mxu0 0
        %456 = vmatmul.mubr.bf16.gmra.mrb[0].mxu0 %v281
        %v457 = vpop.f32.mrb[0].mxu0
        %v458 = vadd.f32 %v316, %v457
        %v459 = vpop.f32.mrb[0].mxu0
        %v460 = vadd.f32 %v320, %v459
        %v461 = vpop.f32.mrb[0].mxu0
        %v462 = vadd.f32 %v316, %v461
        %v463 = vpop.f32.mrb[0].mxu0
        %v464 = vadd.f32 %v320, %v463
        %465 = vmatprep.mubr.bf16.mxu0 0
        %466 = vmatmul.mubr.bf16.gmra.mrb[0].mxu0 %v282
        %v467 = vpop.f32.mrb[0].mxu0
        %v468 = vadd.f32 %v316, %v467
        %v469 = vpop.f32.mrb[0].mxu0
        %v470 = vadd.f32 %v320, %v469
        %v471 = vpop.f32.mrb[0].mxu0
        %v472 = vadd.f32 %v316, %v471
        %v473 = vpop.f32.mrb[0].mxu0
        %v474 = vadd.f32 %v320, %v473
        %475 = vmatprep.mubr.bf16.mxu0 0
        %476 = vmatmul.mubr.bf16.gmra.mrb[0].mxu0 %v283
        %v477 = vpop.f32.mrb[0].mxu0
        %v478 = vadd.f32 %v316, %v477
        %v479 = vpop.f32.mrb[0].mxu0
        %v480 = vadd.f32 %v320, %v479
        %v481 = vpop.f32.mrb[0].mxu0
        %v482 = vadd.f32 %v316, %v481
        %v483 = vpop.f32.mrb[0].mxu0
        %v484 = vadd.f32 %v320, %v483
        %485 = vmatprep.mubr.bf16.mxu0 0
        %486 = vmatmul.mubr.bf16.gmra.mrb[0].mxu0 %v284
        %v487 = vpop.f32.mrb[0].mxu0
        %v488 = vadd.f32 %v316, %v487
        %v489 = vpop.f32.mrb[0].mxu0
        %v490 = vadd.f32 %v320, %v489
        %v491 = vpop.f32.mrb[0].mxu0
        %v492 = vadd.f32 %v316, %v491
        %v493 = vpop.f32.mrb[0].mxu0
        %v494 = vadd.f32 %v320, %v493
        %495 = vmatprep.mubr.bf16.mxu0 0
        %496 = vmatmul.mubr.bf16.gmra.mrb[0].mxu0 %v285
        %v497 = vpop.f32.mrb[0].mxu0
        %v498 = vadd.f32 %v316, %v497
        %v499 = vpop.f32.mrb[0].mxu0
        %v500 = vadd.f32 %v320, %v499
        %v501 = vpop.f32.mrb[0].mxu0
        %v502 = vadd.f32 %v316, %v501
        %v503 = vpop.f32.mrb[0].mxu0
        %v504 = vadd.f32 %v320, %v503
        %505 = vmatprep.mubr.bf16.mxu0 0
        %506 = vmatmul.mubr.bf16.gmra.mrb[0].mxu0 %v286
        %v507 = vpop.f32.mrb[0].mxu0
        %v508 = vadd.f32 %v316, %v507
        %v509 = vpop.f32.mrb[0].mxu0
        %v510 = vadd.f32 %v320, %v509
        %v511 = vpop.f32.mrb[0].mxu0
        %v512 = vadd.f32 %v316, %v511
        %v513 = vpop.f32.mrb[0].mxu0
        %v514 = vadd.f32 %v320, %v513
        %515 = vmatprep.mubr.bf16.mxu0 0
        %516 = vmatmul.mubr.bf16.gmra.mrb[0].mxu0 %v287
        %v517 = vpop.f32.mrb[0].mxu0
        %v518 = vadd.f32 %v316, %v517
        %v519 = vpop.f32.mrb[0].mxu0
        %v520 = vadd.f32 %v320, %v519
        %v521 = vpop.f32.mrb[0].mxu0
        %v522 = vadd.f32 %v316, %v521
        %v523 = vpop.f32.mrb[0].mxu0
        %v524 = vadd.f32 %v320, %v523
        %525 = vmatprep.mubr.bf16.mxu0 0
        %526 = vmatmul.mubr.bf16.gmra.mrb[0].mxu0 %v288
        %v527 = vpop.f32.mrb[0].mxu0
        %v528 = vadd.f32 %v316, %v527
        %v529 = vpop.f32.mrb[0].mxu0
        %v530 = vadd.f32 %v320, %v529
        %v531 = vpop.f32.mrb[0].mxu0
        %v532 = vadd.f32 %v316, %v531
        %v533 = vpop.f32.mrb[0].mxu0
        %v534 = vadd.f32 %v320, %v533
        %535 = vmatprep.mubr.bf16.mxu0 0
        %536 = vmatmul.mubr.bf16.gmra.mrb[0].mxu0 %v289
        %v537 = vpop.f32.mrb[0].mxu0
        %v538 = vadd.f32 %v316, %v537
        %v539 = vpop.f32.mrb[0].mxu0
        %v540 = vadd.f32 %v320, %v539
        %v541 = vpop.f32.mrb[0].mxu0
        %v542 = vadd.f32 %v316, %v541
        %v543 = vpop.f32.mrb[0].mxu0
        %v544 = vadd.f32 %v320, %v543
        %545 = vmatprep.mubr.bf16.mxu0 0
        %546 = vmatmul.mubr.bf16.gmra.mrb[0].mxu0 %v290
        %v547 = vpop.f32.mrb[0].mxu0
        %v548 = vadd.f32 %v316, %v547
        %v549 = vpop.f32.mrb[0].mxu0
        %v550 = vadd.f32 %v320, %v549
        %v551 = vpop.f32.mrb[0].mxu0
        %v552 = vadd.f32 %v316, %v551
        %v553 = vpop.f32.mrb[0].mxu0
        %v554 = vadd.f32 %v320, %v553
        %555 = vmatprep.mubr.bf16.mxu0 0
        %556 = vmatmul.mubr.bf16.gmra.mrb[0].mxu0 %v291
        %v557 = vpop.f32.mrb[0].mxu0
        %v558 = vadd.f32 %v316, %v557
        %v559 = vpop.f32.mrb[0].mxu0
        %v560 = vadd.f32 %v320, %v559
        %v561 = vpop.f32.mrb[0].mxu0
        %v562 = vadd.f32 %v316, %v561
        %v563 = vpop.f32.mrb[0].mxu0
        %v564 = vadd.f32 %v320, %v563
        %565 = vmatprep.mubr.bf16.mxu0 0
        %566 = vmatmul.mubr.bf16.gmra.mrb[0].mxu0 %v292
        %v567 = vpop.f32.mrb[0].mxu0
        %v568 = vadd.f32 %v316, %v567
        %v569 = vpop.f32.mrb[0].mxu0
        %v570 = vadd.f32 %v320, %v569
        %v571 = vpop.f32.mrb[0].mxu0
        %v572 = vadd.f32 %v316, %v571
        %v573 = vpop.f32.mrb[0].mxu0
        %v574 = vadd.f32 %v320, %v573
        %575 = vmatprep.mubr.bf16.mxu0 0
        %576 = vmatmul.mubr.bf16.gmra.mrb[0].mxu0 %v293
        %v577 = vpop.f32.mrb[0].mxu0
        %v578 = vadd.f32 %v316, %v577
        %v579 = vpop.f32.mrb[0].mxu0
        %v580 = vadd.f32 %v320, %v579
        %v581 = vpop.f32.mrb[0].mxu0
        %v582 = vadd.f32 %v316, %v581
        %v583 = vpop.f32.mrb[0].mxu0
        %v584 = vadd.f32 %v320, %v583
        %585 = vmatprep.mubr.bf16.mxu0 0
        %586 = vmatmul.mubr.bf16.gmra.mrb[0].mxu0 %v294
        %v587 = vpop.f32.mrb[0].mxu0
        %v588 = vadd.f32 %v316, %v587
        %v589 = vpop.f32.mrb[0].mxu0
        %v590 = vadd.f32 %v320, %v589
        %v591 = vpop.f32.mrb[0].mxu0
        %v592 = vadd.f32 %v316, %v591
        %v593 = vpop.f32.mrb[0].mxu0
        %v594 = vadd.f32 %v320, %v593
        %595 = vdwg.mxu0
        %v596 = vmul.f32 %v438, %v438
        %v597 = vmul.f32 %v440, %v440
        %v598 = vmul.f32 %v442, %v442
        %v599 = vmul.f32 %v444, %v444
        %v600 = vmul.f32 %v448, %v448
        %v601 = vmul.f32 %v450, %v450
        %v602 = vmul.f32 %v452, %v452
        %v603 = vmul.f32 %v454, %v454
        %v604 = vmul.f32 %v458, %v458
        %v605 = vmul.f32 %v460, %v460
        %v606 = vmul.f32 %v462, %v462
        %v607 = vmul.f32 %v464, %v464
        %v608 = vmul.f32 %v468, %v468
        %v609 = vmul.f32 %v470, %v470
        %v610 = vmul.f32 %v472, %v472
        %v611 = vmul.f32 %v474, %v474
        %v612 = vmul.f32 %v478, %v478
        %v613 = vmul.f32 %v480, %v480
        %v614 = vmul.f32 %v482, %v482
        %v615 = vmul.f32 %v484, %v484
        %v616 = vmul.f32 %v488, %v488
        %v617 = vmul.f32 %v490, %v490
        %v618 = vmul.f32 %v492, %v492
        %v619 = vmul.f32 %v494, %v494
        %v620 = vmul.f32 %v498, %v498
        %v621 = vmul.f32 %v500, %v500
        %v622 = vmul.f32 %v502, %v502
        %v623 = vmul.f32 %v504, %v504
        %v624 = vmul.f32 %v508, %v508
        %v625 = vmul.f32 %v510, %v510
        %v626 = vmul.f32 %v512, %v512
        %v627 = vmul.f32 %v514, %v514
        %v628 = vmul.f32 %v518, %v518
        %v629 = vmul.f32 %v520, %v520
        %v630 = vmul.f32 %v522, %v522
        %v631 = vmul.f32 %v524, %v524
        %v632 = vmul.f32 %v528, %v528
        %v633 = vmul.f32 %v530, %v530
        %v634 = vmul.f32 %v532, %v532
        %v635 = vmul.f32 %v534, %v534
        %v636 = vmul.f32 %v538, %v538
        %v637 = vmul.f32 %v540, %v540
        %v638 = vmul.f32 %v542, %v542
        %v639 = vmul.f32 %v544, %v544
        %v640 = vmul.f32 %v548, %v548
        %v641 = vmul.f32 %v550, %v550
        %v642 = vmul.f32 %v552, %v552
        %v643 = vmul.f32 %v554, %v554
        %v644 = vmul.f32 %v558, %v558
        %v645 = vmul.f32 %v560, %v560
        %v646 = vmul.f32 %v562, %v562
        %v647 = vmul.f32 %v564, %v564
        %v648 = vmul.f32 %v568, %v568
        %v649 = vmul.f32 %v570, %v570
        %v650 = vmul.f32 %v572, %v572
        %v651 = vmul.f32 %v574, %v574
        %v652 = vmul.f32 %v578, %v578
        %v653 = vmul.f32 %v580, %v580
        %v654 = vmul.f32 %v582, %v582
        %v655 = vmul.f32 %v584, %v584
        %v656 = vmul.f32 %v588, %v588
        %v657 = vmul.f32 %v590, %v590
        %v658 = vmul.f32 %v592, %v592
        %v659 = vmul.f32 %v594, %v594
        %v660 = vmul.f32 %v438, %v596
        %v661 = vmul.f32 %v440, %v597
        %v662 = vmul.f32 %v442, %v598
        %v663 = vmul.f32 %v444, %v599
        %v664 = vmul.f32 %v448, %v600
        %v665 = vmul.f32 %v450, %v601
        %v666 = vmul.f32 %v452, %v602
        %v667 = vmul.f32 %v454, %v603
        %v668 = vmul.f32 %v458, %v604
        %v669 = vmul.f32 %v460, %v605
        %v670 = vmul.f32 %v462, %v606
        %v671 = vmul.f32 %v464, %v607
        %v672 = vmul.f32 %v468, %v608
        %v673 = vmul.f32 %v470, %v609
        %v674 = vmul.f32 %v472, %v610
        %v675 = vmul.f32 %v474, %v611
        %v676 = vmul.f32 %v478, %v612
        %v677 = vmul.f32 %v480, %v613
        %v678 = vmul.f32 %v482, %v614
        %v679 = vmul.f32 %v484, %v615
        %v680 = vmul.f32 %v488, %v616
        %v681 = vmul.f32 %v490, %v617
        %v682 = vmul.f32 %v492, %v618
        %v683 = vmul.f32 %v494, %v619
        %v684 = vmul.f32 %v498, %v620
        %v685 = vmul.f32 %v500, %v621
        %v686 = vmul.f32 %v502, %v622
        %v687 = vmul.f32 %v504, %v623
        %v688 = vmul.f32 %v508, %v624
        %v689 = vmul.f32 %v510, %v625
        %v690 = vmul.f32 %v512, %v626
        %v691 = vmul.f32 %v514, %v627
        %v692 = vmul.f32 %v518, %v628
        %v693 = vmul.f32 %v520, %v629
        %v694 = vmul.f32 %v522, %v630
        %v695 = vmul.f32 %v524, %v631
        %v696 = vmul.f32 %v528, %v632
        %v697 = vmul.f32 %v530, %v633
        %v698 = vmul.f32 %v532, %v634
        %v699 = vmul.f32 %v534, %v635
        %v700 = vmul.f32 %v538, %v636
        %v701 = vmul.f32 %v540, %v637
        %v702 = vmul.f32 %v542, %v638
        %v703 = vmul.f32 %v544, %v639
        %v704 = vmul.f32 %v548, %v640
        %v705 = vmul.f32 %v550, %v641
        %v706 = vmul.f32 %v552, %v642
        %v707 = vmul.f32 %v554, %v643
        %v708 = vmul.f32 %v558, %v644
        %v709 = vmul.f32 %v560, %v645
        %v710 = vmul.f32 %v562, %v646
        %v711 = vmul.f32 %v564, %v647
        %v712 = vmul.f32 %v568, %v648
        %v713 = vmul.f32 %v570, %v649
        %v714 = vmul.f32 %v572, %v650
        %v715 = vmul.f32 %v574, %v651
        %v716 = vmul.f32 %v578, %v652
        %v717 = vmul.f32 %v580, %v653
        %v718 = vmul.f32 %v582, %v654
        %v719 = vmul.f32 %v584, %v655
        %v720 = vmul.f32 %v588, %v656
        %v721 = vmul.f32 %v590, %v657
        %v722 = vmul.f32 %v592, %v658
        %v723 = vmul.f32 %v594, %v659
        %v724 = vmul.f32 %v660, 0.044715
        %v725 = vmul.f32 %v661, 0.044715
        %v726 = vmul.f32 %v662, 0.044715
        %v727 = vmul.f32 %v663, 0.044715
        %v728 = vmul.f32 %v664, 0.044715
        %v729 = vmul.f32 %v665, 0.044715
        %v730 = vmul.f32 %v666, 0.044715
        %v731 = vmul.f32 %v667, 0.044715
        %v732 = vmul.f32 %v668, 0.044715
        %v733 = vmul.f32 %v669, 0.044715
        %v734 = vmul.f32 %v670, 0.044715
        %v735 = vmul.f32 %v671, 0.044715
        %v736 = vmul.f32 %v672, 0.044715
        %v737 = vmul.f32 %v673, 0.044715
        %v738 = vmul.f32 %v674, 0.044715
        %v739 = vmul.f32 %v675, 0.044715
        %v740 = vmul.f32 %v676, 0.044715
        %v741 = vmul.f32 %v677, 0.044715
        %v742 = vmul.f32 %v678, 0.044715
        %v743 = vmul.f32 %v679, 0.044715
        %v744 = vmul.f32 %v680, 0.044715
        %v745 = vmul.f32 %v681, 0.044715
        %v746 = vmul.f32 %v682, 0.044715
        %v747 = vmul.f32 %v683, 0.044715
        %v748 = vmul.f32 %v684, 0.044715
        %v749 = vmul.f32 %v685, 0.044715
        %v750 = vmul.f32 %v686, 0.044715
        %v751 = vmul.f32 %v687, 0.044715
        %v752 = vmul.f32 %v688, 0.044715
        %v753 = vmul.f32 %v689, 0.044715
        %v754 = vmul.f32 %v690, 0.044715
        %v755 = vmul.f32 %v691, 0.044715
        %v756 = vmul.f32 %v692, 0.044715
        %v757 = vmul.f32 %v693, 0.044715
        %v758 = vmul.f32 %v694, 0.044715
        %v759 = vmul.f32 %v695, 0.044715
        %v760 = vmul.f32 %v696, 0.044715
        %v761 = vmul.f32 %v697, 0.044715
        %v762 = vmul.f32 %v698, 0.044715
        %v763 = vmul.f32 %v699, 0.044715
        %v764 = vmul.f32 %v700, 0.044715
        %v765 = vmul.f32 %v701, 0.044715
        %v766 = vmul.f32 %v702, 0.044715
        %v767 = vmul.f32 %v703, 0.044715
        %v768 = vmul.f32 %v704, 0.044715
        %v769 = vmul.f32 %v705, 0.044715
        %v770 = vmul.f32 %v706, 0.044715
        %v771 = vmul.f32 %v707, 0.044715
        %v772 = vmul.f32 %v708, 0.044715
        %v773 = vmul.f32 %v709, 0.044715
        %v774 = vmul.f32 %v710, 0.044715
        %v775 = vmul.f32 %v711, 0.044715
        %v776 = vmul.f32 %v712, 0.044715
        %v777 = vmul.f32 %v713, 0.044715
        %v778 = vmul.f32 %v714, 0.044715
        %v779 = vmul.f32 %v715, 0.044715
        %v780 = vmul.f32 %v716, 0.044715
        %v781 = vmul.f32 %v717, 0.044715
        %v782 = vmul.f32 %v718, 0.044715
        %v783 = vmul.f32 %v719, 0.044715
        %v784 = vmul.f32 %v720, 0.044715
        %v785 = vmul.f32 %v721, 0.044715
        %v786 = vmul.f32 %v722, 0.044715
        %v787 = vmul.f32 %v723, 0.044715
        %v788 = vadd.f32 %v438, %v724
        %v789 = vadd.f32 %v440, %v725
        %v790 = vadd.f32 %v442, %v726
        %v791 = vadd.f32 %v444, %v727
        %v792 = vadd.f32 %v448, %v728
        %v793 = vadd.f32 %v450, %v729
        %v794 = vadd.f32 %v452, %v730
        %v795 = vadd.f32 %v454, %v731
        %v796 = vadd.f32 %v458, %v732
        %v797 = vadd.f32 %v460, %v733
        %v798 = vadd.f32 %v462, %v734
        %v799 = vadd.f32 %v464, %v735
        %v800 = vadd.f32 %v468, %v736
        %v801 = vadd.f32 %v470, %v737
        %v802 = vadd.f32 %v472, %v738
        %v803 = vadd.f32 %v474, %v739
        %v804 = vadd.f32 %v478, %v740
        %v805 = vadd.f32 %v480, %v741
        %v806 = vadd.f32 %v482, %v742
        %v807 = vadd.f32 %v484, %v743
        %v808 = vadd.f32 %v488, %v744
        %v809 = vadd.f32 %v490, %v745
        %v810 = vadd.f32 %v492, %v746
        %v811 = vadd.f32 %v494, %v747
        %v812 = vadd.f32 %v498, %v748
        %v813 = vadd.f32 %v500, %v749
        %v814 = vadd.f32 %v502, %v750
        %v815 = vadd.f32 %v504, %v751
        %v816 = vadd.f32 %v508, %v752
        %v817 = vadd.f32 %v510, %v753
        %v818 = vadd.f32 %v512, %v754
        %v819 = vadd.f32 %v514, %v755
        %v820 = vadd.f32 %v518, %v756
        %v821 = vadd.f32 %v520, %v757
        %v822 = vadd.f32 %v522, %v758
        %v823 = vadd.f32 %v524, %v759
        %v824 = vadd.f32 %v528, %v760
        %v825 = vadd.f32 %v530, %v761
        %v826 = vadd.f32 %v532, %v762
        %v827 = vadd.f32 %v534, %v763
        %v828 = vadd.f32 %v538, %v764
        %v829 = vadd.f32 %v540, %v765
        %v830 = vadd.f32 %v542, %v766
        %v831 = vadd.f32 %v544, %v767
        %v832 = vadd.f32 %v548, %v768
        %v833 = vadd.f32 %v550, %v769
        %v834 = vadd.f32 %v552, %v770
        %v835 = vadd.f32 %v554, %v771
        %v836 = vadd.f32 %v558, %v772
        %v837 = vadd.f32 %v560, %v773
        %v838 = vadd.f32 %v562, %v774
        %v839 = vadd.f32 %v564, %v775
        %v840 = vadd.f32 %v568, %v776
        %v841 = vadd.f32 %v570, %v777
        %v842 = vadd.f32 %v572, %v778
        %v843 = vadd.f32 %v574, %v779
        %v844 = vadd.f32 %v578, %v780
        %v845 = vadd.f32 %v580, %v781
        %v846 = vadd.f32 %v582, %v782
        %v847 = vadd.f32 %v584, %v783
        %v848 = vadd.f32 %v588, %v784
        %v849 = vadd.f32 %v590, %v785
        %v850 = vadd.f32 %v592, %v786
        %v851 = vadd.f32 %v594, %v787
        %v852 = vmul.f32 %v788, 0.7978846
        %v853 = vmul.f32 %v789, 0.7978846
        %v854 = vmul.f32 %v790, 0.7978846
        %v855 = vmul.f32 %v791, 0.7978846
        %v856 = vmul.f32 %v792, 0.7978846
        %v857 = vmul.f32 %v793, 0.7978846
        %v858 = vmul.f32 %v794, 0.7978846
        %v859 = vmul.f32 %v795, 0.7978846
        %v860 = vmul.f32 %v796, 0.7978846
        %v861 = vmul.f32 %v797, 0.7978846
        %v862 = vmul.f32 %v798, 0.7978846
        %v863 = vmul.f32 %v799, 0.7978846
        %v864 = vmul.f32 %v800, 0.7978846
        %v865 = vmul.f32 %v801, 0.7978846
        %v866 = vmul.f32 %v802, 0.7978846
        %v867 = vmul.f32 %v803, 0.7978846
        %v868 = vmul.f32 %v804, 0.7978846
        %v869 = vmul.f32 %v805, 0.7978846
        %v870 = vmul.f32 %v806, 0.7978846
        %v871 = vmul.f32 %v807, 0.7978846
        %v872 = vmul.f32 %v808, 0.7978846
        %v873 = vmul.f32 %v809, 0.7978846
        %v874 = vmul.f32 %v810, 0.7978846
        %v875 = vmul.f32 %v811, 0.7978846
        %v876 = vmul.f32 %v812, 0.7978846
        %v877 = vmul.f32 %v813, 0.7978846
        %v878 = vmul.f32 %v814, 0.7978846
        %v879 = vmul.f32 %v815, 0.7978846
        %v880 = vmul.f32 %v816, 0.7978846
        %v881 = vmul.f32 %v817, 0.7978846
        %v882 = vmul.f32 %v818, 0.7978846
        %v883 = vmul.f32 %v819, 0.7978846
        %v884 = vmul.f32 %v820, 0.7978846
        %v885 = vmul.f32 %v821, 0.7978846
        %v886 = vmul.f32 %v822, 0.7978846
        %v887 = vmul.f32 %v823, 0.7978846
        %v888 = vmul.f32 %v824, 0.7978846
        %v889 = vmul.f32 %v825, 0.7978846
        %v890 = vmul.f32 %v826, 0.7978846
        %v891 = vmul.f32 %v827, 0.7978846
        %v892 = vmul.f32 %v828, 0.7978846
        %v893 = vmul.f32 %v829, 0.7978846
        %v894 = vmul.f32 %v830, 0.7978846
        %v895 = vmul.f32 %v831, 0.7978846
        %v896 = vmul.f32 %v832, 0.7978846
        %v897 = vmul.f32 %v833, 0.7978846
        %v898 = vmul.f32 %v834, 0.7978846
        %v899 = vmul.f32 %v835, 0.7978846
        %v900 = vmul.f32 %v836, 0.7978846
        %v901 = vmul.f32 %v837, 0.7978846
        %v902 = vmul.f32 %v838, 0.7978846
        %v903 = vmul.f32 %v839, 0.7978846
        %v904 = vmul.f32 %v840, 0.7978846
        %v905 = vmul.f32 %v841, 0.7978846
        %v906 = vmul.f32 %v842, 0.7978846
        %v907 = vmul.f32 %v843, 0.7978846
        %v908 = vmul.f32 %v844, 0.7978846
        %v909 = vmul.f32 %v845, 0.7978846
        %v910 = vmul.f32 %v846, 0.7978846
        %v911 = vmul.f32 %v847, 0.7978846
        %v912 = vmul.f32 %v848, 0.7978846
        %v913 = vmul.f32 %v849, 0.7978846
        %v914 = vmul.f32 %v850, 0.7978846
        %v915 = vmul.f32 %v851, 0.7978846
        %v916 = vtanh.pop %v852
        %v917 = vtanh.pop %v853
        %v918 = vtanh.pop %v854
        %v919 = vtanh.pop %v855
        %v920 = vtanh.pop %v856
        %v921 = vtanh.pop %v857
        %v922 = vtanh.pop %v858
        %v923 = vtanh.pop %v859
        %v924 = vtanh.pop %v860
        %v925 = vtanh.pop %v861
        %v926 = vtanh.pop %v862
        %v927 = vtanh.pop %v863
        %v928 = vtanh.pop %v864
        %v929 = vtanh.pop %v865
        %v930 = vtanh.pop %v866
        %v931 = vtanh.pop %v867
        %v932 = vtanh.pop %v868
        %v933 = vtanh.pop %v869
        %v934 = vtanh.pop %v870
        %v935 = vtanh.pop %v871
        %v936 = vtanh.pop %v872
        %v937 = vtanh.pop %v873
        %v938 = vtanh.pop %v874
        %v939 = vtanh.pop %v875
        %v940 = vtanh.pop %v876
        %v941 = vtanh.pop %v877
        %v942 = vtanh.pop %v878
        %v943 = vtanh.pop %v879
        %v944 = vtanh.pop %v880
        %v945 = vtanh.pop %v881
        %v946 = vtanh.pop %v882
        %v947 = vtanh.pop %v883
        %v948 = vtanh.pop %v884
        %v949 = vtanh.pop %v885
        %v950 = vtanh.pop %v886
        %v951 = vtanh.pop %v887
        %v952 = vtanh.pop %v888
        %v953 = vtanh.pop %v889
        %v954 = vtanh.pop %v890
        %v955 = vtanh.pop %v891
        %v956 = vtanh.pop %v892
        %v957 = vtanh.pop %v893
        %v958 = vtanh.pop %v894
        %v959 = vtanh.pop %v895
        %v960 = vtanh.pop %v896
        %v961 = vtanh.pop %v897
        %v962 = vtanh.pop %v898
        %v963 = vtanh.pop %v899
        %v964 = vtanh.pop %v900
        %v965 = vtanh.pop %v901
        %v966 = vtanh.pop %v902
        %v967 = vtanh.pop %v903
        %v968 = vtanh.pop %v904
        %v969 = vtanh.pop %v905
        %v970 = vtanh.pop %v906
        %v971 = vtanh.pop %v907
        %v972 = vtanh.pop %v908
        %v973 = vtanh.pop %v909
        %v974 = vtanh.pop %v910
        %v975 = vtanh.pop %v911
        %v976 = vtanh.pop %v912
        %v977 = vtanh.pop %v913
        %v978 = vtanh.pop %v914
        %v979 = vtanh.pop %v915
        %v980 = vadd.f32 %v916, 1.0
        %v981 = vadd.f32 %v917, 1.0
        %v982 = vadd.f32 %v918, 1.0
        %v983 = vadd.f32 %v919, 1.0
        %v984 = vadd.f32 %v920, 1.0
        %v985 = vadd.f32 %v921, 1.0
        %v986 = vadd.f32 %v922, 1.0
        %v987 = vadd.f32 %v923, 1.0
        %v988 = vadd.f32 %v924, 1.0
        %v989 = vadd.f32 %v925, 1.0
        %v990 = vadd.f32 %v926, 1.0
        %v991 = vadd.f32 %v927, 1.0
        %v992 = vadd.f32 %v928, 1.0
        %v993 = vadd.f32 %v929, 1.0
        %v994 = vadd.f32 %v930, 1.0
        %v995 = vadd.f32 %v931, 1.0
        %v996 = vadd.f32 %v932, 1.0
        %v997 = vadd.f32 %v933, 1.0
        %v998 = vadd.f32 %v934, 1.0
        %v999 = vadd.f32 %v935, 1.0
        %v1000 = vadd.f32 %v936, 1.0
        %v1001 = vadd.f32 %v937, 1.0
        %v1002 = vadd.f32 %v938, 1.0
        %v1003 = vadd.f32 %v939, 1.0
        %v1004 = vadd.f32 %v940, 1.0
        %v1005 = vadd.f32 %v941, 1.0
        %v1006 = vadd.f32 %v942, 1.0
        %v1007 = vadd.f32 %v943, 1.0
        %v1008 = vadd.f32 %v944, 1.0
        %v1009 = vadd.f32 %v945, 1.0
        %v1010 = vadd.f32 %v946, 1.0
        %v1011 = vadd.f32 %v947, 1.0
        %v1012 = vadd.f32 %v948, 1.0
        %v1013 = vadd.f32 %v949, 1.0
        %v1014 = vadd.f32 %v950, 1.0
        %v1015 = vadd.f32 %v951, 1.0
        %v1016 = vadd.f32 %v952, 1.0
        %v1017 = vadd.f32 %v953, 1.0
        %v1018 = vadd.f32 %v954, 1.0
        %v1019 = vadd.f32 %v955, 1.0
        %v1020 = vadd.f32 %v956, 1.0
        %v1021 = vadd.f32 %v957, 1.0
        %v1022 = vadd.f32 %v958, 1.0
        %v1023 = vadd.f32 %v959, 1.0
        %v1024 = vadd.f32 %v960, 1.0
        %v1025 = vadd.f32 %v961, 1.0
        %v1026 = vadd.f32 %v962, 1.0
        %v1027 = vadd.f32 %v963, 1.0
        %v1028 = vadd.f32 %v964, 1.0
        %v1029 = vadd.f32 %v965, 1.0
        %v1030 = vadd.f32 %v966, 1.0
        %v1031 = vadd.f32 %v967, 1.0
        %v1032 = vadd.f32 %v968, 1.0
        %v1033 = vadd.f32 %v969, 1.0
        %v1034 = vadd.f32 %v970, 1.0
        %v1035 = vadd.f32 %v971, 1.0
        %v1036 = vadd.f32 %v972, 1.0
        %v1037 = vadd.f32 %v973, 1.0
        %v1038 = vadd.f32 %v974, 1.0
        %v1039 = vadd.f32 %v975, 1.0
        %v1040 = vadd.f32 %v976, 1.0
        %v1041 = vadd.f32 %v977, 1.0
        %v1042 = vadd.f32 %v978, 1.0
        %v1043 = vadd.f32 %v979, 1.0
        %v1044 = vmul.f32 %v980, 0.5
        %v1045 = vmul.f32 %v981, 0.5
        %v1046 = vmul.f32 %v982, 0.5
        %v1047 = vmul.f32 %v983, 0.5
        %v1048 = vmul.f32 %v984, 0.5
        %v1049 = vmul.f32 %v985, 0.5
        %v1050 = vmul.f32 %v986, 0.5
        %v1051 = vmul.f32 %v987, 0.5
        %v1052 = vmul.f32 %v988, 0.5
        %v1053 = vmul.f32 %v989, 0.5
        %v1054 = vmul.f32 %v990, 0.5
        %v1055 = vmul.f32 %v991, 0.5
        %v1056 = vmul.f32 %v992, 0.5
        %v1057 = vmul.f32 %v993, 0.5
        %v1058 = vmul.f32 %v994, 0.5
        %v1059 = vmul.f32 %v995, 0.5
        %v1060 = vmul.f32 %v996, 0.5
        %v1061 = vmul.f32 %v997, 0.5
        %v1062 = vmul.f32 %v998, 0.5
        %v1063 = vmul.f32 %v999, 0.5
        %v1064 = vmul.f32 %v1000, 0.5
        %v1065 = vmul.f32 %v1001, 0.5
        %v1066 = vmul.f32 %v1002, 0.5
        %v1067 = vmul.f32 %v1003, 0.5
        %v1068 = vmul.f32 %v1004, 0.5
        %v1069 = vmul.f32 %v1005, 0.5
        %v1070 = vmul.f32 %v1006, 0.5
        %v1071 = vmul.f32 %v1007, 0.5
        %v1072 = vmul.f32 %v1008, 0.5
        %v1073 = vmul.f32 %v1009, 0.5
        %v1074 = vmul.f32 %v1010, 0.5
        %v1075 = vmul.f32 %v1011, 0.5
        %v1076 = vmul.f32 %v1012, 0.5
        %v1077 = vmul.f32 %v1013, 0.5
        %v1078 = vmul.f32 %v1014, 0.5
        %v1079 = vmul.f32 %v1015, 0.5
        %v1080 = vmul.f32 %v1016, 0.5
        %v1081 = vmul.f32 %v1017, 0.5
        %v1082 = vmul.f32 %v1018, 0.5
        %v1083 = vmul.f32 %v1019, 0.5
        %v1084 = vmul.f32 %v1020, 0.5
        %v1085 = vmul.f32 %v1021, 0.5
        %v1086 = vmul.f32 %v1022, 0.5
        %v1087 = vmul.f32 %v1023, 0.5
        %v1088 = vmul.f32 %v1024, 0.5
        %v1089 = vmul.f32 %v1025, 0.5
        %v1090 = vmul.f32 %v1026, 0.5
        %v1091 = vmul.f32 %v1027, 0.5
        %v1092 = vmul.f32 %v1028, 0.5
        %v1093 = vmul.f32 %v1029, 0.5
        %v1094 = vmul.f32 %v1030, 0.5
        %v1095 = vmul.f32 %v1031, 0.5
        %v1096 = vmul.f32 %v1032, 0.5
        %v1097 = vmul.f32 %v1033, 0.5
        %v1098 = vmul.f32 %v1034, 0.5
        %v1099 = vmul.f32 %v1035, 0.5
        %v1100 = vmul.f32 %v1036, 0.5
        %v1101 = vmul.f32 %v1037, 0.5
        %v1102 = vmul.f32 %v1038, 0.5
        %v1103 = vmul.f32 %v1039, 0.5
        %v1104 = vmul.f32 %v1040, 0.5
        %v1105 = vmul.f32 %v1041, 0.5
        %v1106 = vmul.f32 %v1042, 0.5
        %v1107 = vmul.f32 %v1043, 0.5
        %v1108 = vmul.f32 %v438, %v1044
        %v1109 = vmul.f32 %v440, %v1045
        %v1110 = vmul.f32 %v442, %v1046
        %v1111 = vmul.f32 %v444, %v1047
        %v1112 = vmul.f32 %v448, %v1048
        %v1113 = vmul.f32 %v450, %v1049
        %v1114 = vmul.f32 %v452, %v1050
        %v1115 = vmul.f32 %v454, %v1051
        %v1116 = vmul.f32 %v458, %v1052
        %v1117 = vmul.f32 %v460, %v1053
        %v1118 = vmul.f32 %v462, %v1054
        %v1119 = vmul.f32 %v464, %v1055
        %v1120 = vmul.f32 %v468, %v1056
        %v1121 = vmul.f32 %v470, %v1057
        %v1122 = vmul.f32 %v472, %v1058
        %v1123 = vmul.f32 %v474, %v1059
        %v1124 = vmul.f32 %v478, %v1060
        %v1125 = vmul.f32 %v480, %v1061
        %v1126 = vmul.f32 %v482, %v1062
        %v1127 = vmul.f32 %v484, %v1063
        %v1128 = vmul.f32 %v488, %v1064
        %v1129 = vmul.f32 %v490, %v1065
        %v1130 = vmul.f32 %v492, %v1066
        %v1131 = vmul.f32 %v494, %v1067
        %v1132 = vmul.f32 %v498, %v1068
        %v1133 = vmul.f32 %v500, %v1069
        %v1134 = vmul.f32 %v502, %v1070
        %v1135 = vmul.f32 %v504, %v1071
        %v1136 = vmul.f32 %v508, %v1072
        %v1137 = vmul.f32 %v510, %v1073
        %v1138 = vmul.f32 %v512, %v1074
        %v1139 = vmul.f32 %v514, %v1075
        %v1140 = vmul.f32 %v518, %v1076
        %v1141 = vmul.f32 %v520, %v1077
        %v1142 = vmul.f32 %v522, %v1078
        %v1143 = vmul.f32 %v524, %v1079
        %v1144 = vmul.f32 %v528, %v1080
        %v1145 = vmul.f32 %v530, %v1081
        %v1146 = vmul.f32 %v532, %v1082
        %v1147 = vmul.f32 %v534, %v1083
        %v1148 = vmul.f32 %v538, %v1084
        %v1149 = vmul.f32 %v540, %v1085
        %v1150 = vmul.f32 %v542, %v1086
        %v1151 = vmul.f32 %v544, %v1087
        %v1152 = vmul.f32 %v548, %v1088
        %v1153 = vmul.f32 %v550, %v1089
        %v1154 = vmul.f32 %v552, %v1090
        %v1155 = vmul.f32 %v554, %v1091
        %v1156 = vmul.f32 %v558, %v1092
        %v1157 = vmul.f32 %v560, %v1093
        %v1158 = vmul.f32 %v562, %v1094
        %v1159 = vmul.f32 %v564, %v1095
        %v1160 = vmul.f32 %v568, %v1096
        %v1161 = vmul.f32 %v570, %v1097
        %v1162 = vmul.f32 %v572, %v1098
        %v1163 = vmul.f32 %v574, %v1099
        %v1164 = vmul.f32 %v578, %v1100
        %v1165 = vmul.f32 %v580, %v1101
        %v1166 = vmul.f32 %v582, %v1102
        %v1167 = vmul.f32 %v584, %v1103
        %v1168 = vmul.f32 %v588, %v1104
        %v1169 = vmul.f32 %v590, %v1105
        %v1170 = vmul.f32 %v592, %v1106
        %v1171 = vmul.f32 %v594, %v1107
        %v1172 = vpack.c.bf16 %v1110, %v1108
        %v1173 = vpack.c.bf16 %v1111, %v1109
        %v1174 = vpack.c.bf16 %v1114, %v1112
        %v1175 = vpack.c.bf16 %v1115, %v1113
        %v1176 = vpack.c.bf16 %v1118, %v1116
        %v1177 = vpack.c.bf16 %v1119, %v1117
        %v1178 = vpack.c.bf16 %v1122, %v1120
        %v1179 = vpack.c.bf16 %v1123, %v1121
        %v1180 = vpack.c.bf16 %v1126, %v1124
        %v1181 = vpack.c.bf16 %v1127, %v1125
        %v1182 = vpack.c.bf16 %v1130, %v1128
        %v1183 = vpack.c.bf16 %v1131, %v1129
        %v1184 = vpack.c.bf16 %v1134, %v1132
        %v1185 = vpack.c.bf16 %v1135, %v1133
        %v1186 = vpack.c.bf16 %v1138, %v1136
        %v1187 = vpack.c.bf16 %v1139, %v1137
        %v1188 = vpack.c.bf16 %v1142, %v1140
        %v1189 = vpack.c.bf16 %v1143, %v1141
        %v1190 = vpack.c.bf16 %v1146, %v1144
        %v1191 = vpack.c.bf16 %v1147, %v1145
        %v1192 = vpack.c.bf16 %v1150, %v1148
        %v1193 = vpack.c.bf16 %v1151, %v1149
        %v1194 = vpack.c.bf16 %v1154, %v1152
        %v1195 = vpack.c.bf16 %v1155, %v1153
        %v1196 = vpack.c.bf16 %v1158, %v1156
        %v1197 = vpack.c.bf16 %v1159, %v1157
        %v1198 = vpack.c.bf16 %v1162, %v1160
        %v1199 = vpack.c.bf16 %v1163, %v1161
        %v1200 = vpack.c.bf16 %v1166, %v1164
        %v1201 = vpack.c.bf16 %v1167, %v1165
        %v1202 = vpack.c.bf16 %v1170, %v1168
        %v1203 = vpack.c.bf16 %v1171, %v1169
        %v1204 = vld [vmem:[%s3] sm:$0xf]
        %v1205 = vld [vmem:[%s3 + $0x4] sm:$0xf]
        %v1206 = vld [vmem:[%s3 + $0x8] sm:$0xf]
        %v1207 = vld [vmem:[%s3 + $0xc] sm:$0xf]
        %v1208 = vld [vmem:[%s3 + $0x10] sm:$0xf]
        %v1209 = vld [vmem:[%s3 + $0x14] sm:$0xf]
        %v1210 = vld [vmem:[%s3 + $0x18] sm:$0xf]
        %v1211 = vld [vmem:[%s3 + $0x1c] sm:$0xf]
        %v1212 = vld [vmem:[%s3 + $0x20] sm:$0xf]
        %v1213 = vld [vmem:[%s3 + $0x24] sm:$0xf]
        %v1214 = vld [vmem:[%s3 + $0x28] sm:$0xf]
        %v1215 = vld [vmem:[%s3 + $0x2c] sm:$0xf]
        %v1216 = vld [vmem:[%s3 + $0x30] sm:$0xf]
        %v1217 = vld [vmem:[%s3 + $0x34] sm:$0xf]
        %v1218 = vld [vmem:[%s3 + $0x38] sm:$0xf]
        %v1219 = vld [vmem:[%s3 + $0x3c] sm:$0xf]
        %v1220 = vld [vmem:[%s3 + $0x40] sm:$0xf]
        %v1221 = vld [vmem:[%s3 + $0x44] sm:$0xf]
        %v1222 = vld [vmem:[%s3 + $0x48] sm:$0xf]
        %v1223 = vld [vmem:[%s3 + $0x4c] sm:$0xf]
        %v1224 = vld [vmem:[%s3 + $0x50] sm:$0xf]
        %v1225 = vld [vmem:[%s3 + $0x54] sm:$0xf]
        %v1226 = vld [vmem:[%s3 + $0x58] sm:$0xf]
        %v1227 = vld [vmem:[%s3 + $0x5c] sm:$0xf]
        %v1228 = vld [vmem:[%s3 + $0x60] sm:$0xf]
        %v1229 = vld [vmem:[%s3 + $0x64] sm:$0xf]
        %v1230 = vld [vmem:[%s3 + $0x68] sm:$0xf]
        %v1231 = vld [vmem:[%s3 + $0x6c] sm:$0xf]
        %v1232 = vld [vmem:[%s3 + $0x70] sm:$0xf]
        %v1233 = vld [vmem:[%s3 + $0x74] sm:$0xf]
        %v1234 = vld [vmem:[%s3 + $0x78] sm:$0xf]
        %v1235 = vld [vmem:[%s3 + $0x7c] sm:$0xf]
        %v1236 = vld [vmem:[%s4] sm:$0x1]
        %v1238 = vlaneseq
        %v1239 = vshrl.u32 %v1238, 7
        %v1240 = vsub.s32 0, %v1239
        %v1241 = vrot.slane %v1236, %v1240
        %v1275 = vunpack.c.l.b16 %v1204
        %v1276 = vunpack.c.l.b16 %v1205
        %v1277 = vunpack.c.l.b16 %v1206
        %v1278 = vunpack.c.l.b16 %v1207
        %v1279 = vunpack.c.l.b16 %v1208
        %v1280 = vunpack.c.l.b16 %v1209
        %v1281 = vunpack.c.l.b16 %v1210
        %v1282 = vunpack.c.l.b16 %v1211
        %v1283 = vunpack.c.l.b16 %v1212
        %v1284 = vunpack.c.l.b16 %v1213
        %v1285 = vunpack.c.l.b16 %v1214
        %v1286 = vunpack.c.l.b16 %v1215
        %v1287 = vunpack.c.l.b16 %v1216
        %v1288 = vunpack.c.l.b16 %v1217
        %v1289 = vunpack.c.l.b16 %v1218
        %v1290 = vunpack.c.l.b16 %v1219
        %v1291 = vunpack.c.l.b16 %v1220
        %v1292 = vunpack.c.l.b16 %v1221
        %v1293 = vunpack.c.l.b16 %v1222
        %v1294 = vunpack.c.l.b16 %v1223
        %v1295 = vunpack.c.l.b16 %v1224
        %v1296 = vunpack.c.l.b16 %v1225
        %v1297 = vunpack.c.l.b16 %v1226
        %v1298 = vunpack.c.l.b16 %v1227
        %v1299 = vunpack.c.l.b16 %v1228
        %v1300 = vunpack.c.l.b16 %v1229
        %v1301 = vunpack.c.l.b16 %v1230
        %v1302 = vunpack.c.l.b16 %v1231
        %v1303 = vunpack.c.l.b16 %v1232
        %v1304 = vunpack.c.l.b16 %v1233
        %v1305 = vunpack.c.l.b16 %v1234
        %v1306 = vunpack.c.l.b16 %v1235
        %v1307 = vpack.c.b16 %v1276, %v1275
        %v1308 = vpack.c.b16 %v1278, %v1277
        %v1309 = vpack.c.b16 %v1280, %v1279
        %v1310 = vpack.c.b16 %v1282, %v1281
        %v1311 = vpack.c.b16 %v1284, %v1283
        %v1312 = vpack.c.b16 %v1286, %v1285
        %v1313 = vpack.c.b16 %v1288, %v1287
        %v1314 = vpack.c.b16 %v1290, %v1289
        %v1315 = vpack.c.b16 %v1292, %v1291
        %v1316 = vpack.c.b16 %v1294, %v1293
        %v1317 = vpack.c.b16 %v1296, %v1295
        %v1318 = vpack.c.b16 %v1298, %v1297
        %v1319 = vpack.c.b16 %v1300, %v1299
        %v1320 = vpack.c.b16 %v1302, %v1301
        %v1321 = vpack.c.b16 %v1304, %v1303
        %v1322 = vpack.c.b16 %v1306, %v1305
        %1339 = vmatprep.subr.bf16.mxu0 0
        %1340 = vmatpush1.bf16.msra.mxu0 %v1307
        %1341 = vmatprep.subr.bf16.mxu0 0
        %1342 = vmatpush1.bf16.msra.mxu0 %v1308
        %1343 = vmatprep.subr.bf16.mxu0 0
        %1344 = vmatpush1.bf16.msra.mxu0 %v1309
        %1345 = vmatprep.subr.bf16.mxu0 0
        %1346 = vmatpush1.bf16.msra.mxu0 %v1310
        %1347 = vmatprep.subr.bf16.mxu0 0
        %1348 = vmatpush1.bf16.msra.mxu0 %v1311
        %1349 = vmatprep.subr.bf16.mxu0 0
        %1350 = vmatpush1.bf16.msra.mxu0 %v1312
        %1351 = vmatprep.subr.bf16.mxu0 0
        %1352 = vmatpush1.bf16.msra.mxu0 %v1313
        %1353 = vmatprep.subr.bf16.mxu0 0
        %1354 = vmatpush1.bf16.msra.mxu0 %v1314
        %1355 = vmatprep.subr.bf16.mxu0 0
        %1356 = vmatpush1.bf16.msra.mxu0 %v1315
        %1357 = vmatprep.subr.bf16.mxu0 0
        %1358 = vmatpush1.bf16.msra.mxu0 %v1316
        %1359 = vmatprep.subr.bf16.mxu0 0
        %1360 = vmatpush1.bf16.msra.mxu0 %v1317
        %1361 = vmatprep.subr.bf16.mxu0 0
        %1362 = vmatpush1.bf16.msra.mxu0 %v1318
        %1363 = vmatprep.subr.bf16.mxu0 0
        %1364 = vmatpush1.bf16.msra.mxu0 %v1319
        %1365 = vmatprep.subr.bf16.mxu0 0
        %1366 = vmatpush1.bf16.msra.mxu0 %v1320
        %1367 = vmatprep.subr.bf16.mxu0 0
        %1368 = vmatpush1.bf16.msra.mxu0 %v1321
        %1369 = vmatprep.subr.bf16.mxu0 0
        %1370 = vmatpush1.bf16.msra.mxu0 %v1322
        %1371 = vmatprep.mubr.bf16.mxu0 %v1173
        %1372 = vmatmul.mubr.bf16.gmra.mrb[0].mxu0 %v1172
        %v1373 = vpop.f32.mrb[0].mxu0
        %v1374 = vadd.f32 %v1241, %v1373
        %v1375 = vpop.f32.mrb[0].mxu0
        %v1376 = vpop.f32.mrb[0].mxu0
        %v1377 = vadd.f32 %v1241, %v1376
        %v1378 = vpop.f32.mrb[0].mxu0
        %1379 = vmatprep.mubr.bf16.mxu0 %v1175
        %1380 = vmatmul.mubr.bf16.gmra.mrb[0].mxu0 %v1174
        %v1381 = vpop.f32.mrb[0].mxu0
        %v1382 = vadd.f32 %v1241, %v1381
        %v1383 = vpop.f32.mrb[0].mxu0
        %v1384 = vpop.f32.mrb[0].mxu0
        %v1385 = vadd.f32 %v1241, %v1384
        %v1386 = vpop.f32.mrb[0].mxu0
        %1387 = vmatprep.mubr.bf16.mxu0 %v1177
        %1388 = vmatmul.mubr.bf16.gmra.mrb[0].mxu0 %v1176
        %v1389 = vpop.f32.mrb[0].mxu0
        %v1390 = vadd.f32 %v1241, %v1389
        %v1391 = vpop.f32.mrb[0].mxu0
        %v1392 = vpop.f32.mrb[0].mxu0
        %v1393 = vadd.f32 %v1241, %v1392
        %v1394 = vpop.f32.mrb[0].mxu0
        %1395 = vmatprep.mubr.bf16.mxu0 %v1179
        %1396 = vmatmul.mubr.bf16.gmra.mrb[0].mxu0 %v1178
        %v1397 = vpop.f32.mrb[0].mxu0
        %v1398 = vadd.f32 %v1241, %v1397
        %v1399 = vpop.f32.mrb[0].mxu0
        %v1400 = vpop.f32.mrb[0].mxu0
        %v1401 = vadd.f32 %v1241, %v1400
        %v1402 = vpop.f32.mrb[0].mxu0
        %1403 = vmatprep.mubr.bf16.mxu0 %v1181
        %1404 = vmatmul.mubr.bf16.gmra.mrb[0].mxu0 %v1180
        %v1405 = vpop.f32.mrb[0].mxu0
        %v1406 = vadd.f32 %v1241, %v1405
        %v1407 = vpop.f32.mrb[0].mxu0
        %v1408 = vpop.f32.mrb[0].mxu0
        %v1409 = vadd.f32 %v1241, %v1408
        %v1410 = vpop.f32.mrb[0].mxu0
        %1411 = vmatprep.mubr.bf16.mxu0 %v1183
        %1412 = vmatmul.mubr.bf16.gmra.mrb[0].mxu0 %v1182
        %v1413 = vpop.f32.mrb[0].mxu0
        %v1414 = vadd.f32 %v1241, %v1413
        %v1415 = vpop.f32.mrb[0].mxu0
        %v1416 = vpop.f32.mrb[0].mxu0
        %v1417 = vadd.f32 %v1241, %v1416
        %v1418 = vpop.f32.mrb[0].mxu0
        %1419 = vmatprep.mubr.bf16.mxu0 %v1185
        %1420 = vmatmul.mubr.bf16.gmra.mrb[0].mxu0 %v1184
        %v1421 = vpop.f32.mrb[0].mxu0
        %v1422 = vadd.f32 %v1241, %v1421
        %v1423 = vpop.f32.mrb[0].mxu0
        %v1424 = vpop.f32.mrb[0].mxu0
        %v1425 = vadd.f32 %v1241, %v1424
        %v1426 = vpop.f32.mrb[0].mxu0
        %1427 = vmatprep.mubr.bf16.mxu0 %v1187
        %1428 = vmatmul.mubr.bf16.gmra.mrb[0].mxu0 %v1186
        %v1429 = vpop.f32.mrb[0].mxu0
        %v1430 = vadd.f32 %v1241, %v1429
        %v1431 = vpop.f32.mrb[0].mxu0
        %v1432 = vpop.f32.mrb[0].mxu0
        %v1433 = vadd.f32 %v1241, %v1432
        %v1434 = vpop.f32.mrb[0].mxu0
        %1435 = vmatprep.mubr.bf16.mxu0 %v1189
        %1436 = vmatmul.mubr.bf16.gmra.mrb[0].mxu0 %v1188
        %v1437 = vpop.f32.mrb[0].mxu0
        %v1438 = vadd.f32 %v1241, %v1437
        %v1439 = vpop.f32.mrb[0].mxu0
        %v1440 = vpop.f32.mrb[0].mxu0
        %v1441 = vadd.f32 %v1241, %v1440
        %v1442 = vpop.f32.mrb[0].mxu0
        %1443 = vmatprep.mubr.bf16.mxu0 %v1191
        %1444 = vmatmul.mubr.bf16.gmra.mrb[0].mxu0 %v1190
        %v1445 = vpop.f32.mrb[0].mxu0
        %v1446 = vadd.f32 %v1241, %v1445
        %v1447 = vpop.f32.mrb[0].mxu0
        %v1448 = vpop.f32.mrb[0].mxu0
        %v1449 = vadd.f32 %v1241, %v1448
        %v1450 = vpop.f32.mrb[0].mxu0
        %1451 = vmatprep.mubr.bf16.mxu0 %v1193
        %1452 = vmatmul.mubr.bf16.gmra.mrb[0].mxu0 %v1192
        %v1453 = vpop.f32.mrb[0].mxu0
        %v1454 = vadd.f32 %v1241, %v1453
        %v1455 = vpop.f32.mrb[0].mxu0
        %v1456 = vpop.f32.mrb[0].mxu0
        %v1457 = vadd.f32 %v1241, %v1456
        %v1458 = vpop.f32.mrb[0].mxu0
        %1459 = vmatprep.mubr.bf16.mxu0 %v1195
        %1460 = vmatmul.mubr.bf16.gmra.mrb[0].mxu0 %v1194
        %v1461 = vpop.f32.mrb[0].mxu0
        %v1462 = vadd.f32 %v1241, %v1461
        %v1463 = vpop.f32.mrb[0].mxu0
        %v1464 = vpop.f32.mrb[0].mxu0
        %v1465 = vadd.f32 %v1241, %v1464
        %v1466 = vpop.f32.mrb[0].mxu0
        %1467 = vmatprep.mubr.bf16.mxu0 %v1197
        %1468 = vmatmul.mubr.bf16.gmra.mrb[0].mxu0 %v1196
        %v1469 = vpop.f32.mrb[0].mxu0
        %v1470 = vadd.f32 %v1241, %v1469
        %v1471 = vpop.f32.mrb[0].mxu0
        %v1472 = vpop.f32.mrb[0].mxu0
        %v1473 = vadd.f32 %v1241, %v1472
        %v1474 = vpop.f32.mrb[0].mxu0
        %1475 = vmatprep.mubr.bf16.mxu0 %v1199
        %1476 = vmatmul.mubr.bf16.gmra.mrb[0].mxu0 %v1198
        %v1477 = vpop.f32.mrb[0].mxu0
        %v1478 = vadd.f32 %v1241, %v1477
        %v1479 = vpop.f32.mrb[0].mxu0
        %v1480 = vpop.f32.mrb[0].mxu0
        %v1481 = vadd.f32 %v1241, %v1480
        %v1482 = vpop.f32.mrb[0].mxu0
        %1483 = vmatprep.mubr.bf16.mxu0 %v1201
        %1484 = vmatmul.mubr.bf16.gmra.mrb[0].mxu0 %v1200
        %v1485 = vpop.f32.mrb[0].mxu0
        %v1486 = vadd.f32 %v1241, %v1485
        %v1487 = vpop.f32.mrb[0].mxu0
        %v1488 = vpop.f32.mrb[0].mxu0
        %v1489 = vadd.f32 %v1241, %v1488
        %v1490 = vpop.f32.mrb[0].mxu0
        %1491 = vmatprep.mubr.bf16.mxu0 %v1203
        %1492 = vmatmul.mubr.bf16.gmra.mrb[0].mxu0 %v1202
        %v1493 = vpop.f32.mrb[0].mxu0
        %v1494 = vadd.f32 %v1241, %v1493
        %v1495 = vpop.f32.mrb[0].mxu0
        %v1496 = vpop.f32.mrb[0].mxu0
        %v1497 = vadd.f32 %v1241, %v1496
        %v1498 = vpop.f32.mrb[0].mxu0
        %1499 = vdwg.mxu0
        %v1500 = vadd.f32 %v1374, %v247
        %v1501 = vadd.f32 %v1377, %v248
        %v1502 = vadd.f32 %v1382, %v249
        %v1503 = vadd.f32 %v1385, %v250
        %v1504 = vadd.f32 %v1390, %v251
        %v1505 = vadd.f32 %v1393, %v252
        %v1506 = vadd.f32 %v1398, %v253
        %v1507 = vadd.f32 %v1401, %v254
        %v1508 = vadd.f32 %v1406, %v255
        %v1509 = vadd.f32 %v1409, %v256
        %v1510 = vadd.f32 %v1414, %v257
        %v1511 = vadd.f32 %v1417, %v258
        %v1512 = vadd.f32 %v1422, %v259
        %v1513 = vadd.f32 %v1425, %v260
        %v1514 = vadd.f32 %v1430, %v261
        %v1515 = vadd.f32 %v1433, %v262
        %v1516 = vadd.f32 %v1438, %v263
        %v1517 = vadd.f32 %v1441, %v264
        %v1518 = vadd.f32 %v1446, %v265
        %v1519 = vadd.f32 %v1449, %v266
        %v1520 = vadd.f32 %v1454, %v267
        %v1521 = vadd.f32 %v1457, %v268
        %v1522 = vadd.f32 %v1462, %v269
        %v1523 = vadd.f32 %v1465, %v270
        %v1524 = vadd.f32 %v1470, %v271
        %v1525 = vadd.f32 %v1473, %v272
        %v1526 = vadd.f32 %v1478, %v273
        %v1527 = vadd.f32 %v1481, %v274
        %v1528 = vadd.f32 %v1486, %v275
        %v1529 = vadd.f32 %v1489, %v276
        %v1530 = vadd.f32 %v1494, %v277
        %v1531 = vadd.f32 %v1497, %v278
        %1532 = vst [vmem:[%s226] sm:$0xff] %v1500
        %1533 = vst [vmem:[%s226 + $0x8] sm:$0xff] %v1501
        %1534 = vst [vmem:[%s226 + $0x10] sm:$0xff] %v1502
        %1535 = vst [vmem:[%s226 + $0x18] sm:$0xff] %v1503
        %1536 = vst [vmem:[%s226 + $0x20] sm:$0xff] %v1504
        %1537 = vst [vmem:[%s226 + $0x28] sm:$0xff] %v1505
        %1538 = vst [vmem:[%s226 + $0x30] sm:$0xff] %v1506
        %1539 = vst [vmem:[%s226 + $0x38] sm:$0xff] %v1507
        %1540 = vst [vmem:[%s226 + $0x40] sm:$0xff] %v1508
        %1541 = vst [vmem:[%s226 + $0x48] sm:$0xff] %v1509
        %1542 = vst [vmem:[%s226 + $0x50] sm:$0xff] %v1510
        %1543 = vst [vmem:[%s226 + $0x58] sm:$0xff] %v1511
        %1544 = vst [vmem:[%s226 + $0x60] sm:$0xff] %v1512
        %1545 = vst [vmem:[%s226 + $0x68] sm:$0xff] %v1513
        %1546 = vst [vmem:[%s226 + $0x70] sm:$0xff] %v1514
        %1547 = vst [vmem:[%s226 + $0x78] sm:$0xff] %v1515
        %1548 = vst [vmem:[%s226 + $0x80] sm:$0xff] %v1516
        %1549 = vst [vmem:[%s226 + $0x88] sm:$0xff] %v1517
        %1550 = vst [vmem:[%s226 + $0x90] sm:$0xff] %v1518
        %1551 = vst [vmem:[%s226 + $0x98] sm:$0xff] %v1519
        %1552 = vst [vmem:[%s226 + $0xa0] sm:$0xff] %v1520
        %1553 = vst [vmem:[%s226 + $0xa8] sm:$0xff] %v1521
        %1554 = vst [vmem:[%s226 + $0xb0] sm:$0xff] %v1522
        %1555 = vst [vmem:[%s226 + $0xb8] sm:$0xff] %v1523
        %1556 = vst [vmem:[%s226 + $0xc0] sm:$0xff] %v1524
        %1557 = vst [vmem:[%s226 + $0xc8] sm:$0xff] %v1525
        %1558 = vst [vmem:[%s226 + $0xd0] sm:$0xff] %v1526
        %1559 = vst [vmem:[%s226 + $0xd8] sm:$0xff] %v1527
        %1560 = vst [vmem:[%s226 + $0xe0] sm:$0xff] %v1528
        %1561 = vst [vmem:[%s226 + $0xe8] sm:$0xff] %v1529
        %1562 = vst [vmem:[%s226 + $0xf0] sm:$0xff] %v1530
        %1563 = vst [vmem:[%s226 + $0xf8] sm:$0xff] %v1531
        %s1564 = sand.u32 %s134, 1
        %s1565 = sand.u32 %s134, 1
        %s1566 = smul.addr %s1565, 256
        %s1567 = scalar_lea.vmem [#allocation2], %s1566
        // Predicated region
        $region41: #{residual_forward.1} parent=39 // pred_check
          %p1568 = pneg %p144
        $region42: #{residual_forward.1} parent=39 // pred_check_branch
          %1570 = sbr.rel (%p1568) target = $region44
        $region43: #{residual_forward.1} parent=39 // pred_region
          %s1571 = smul.u32 32, %s16
          %s1572 = ssub.s32 38, %s1571
          %p1573 = scmp.lt.s32.totalorder %s1572, 32
          %s1574 = scalar_select %p1573, %s1572, 32
          %s1575 = smul.u32 128, %s1574
          %p1576 = scmp.ne.s32.totalorder 0, %s1575
          %s1577 = smul.addr %s1571, 8
          %s1578 = scalar_lea.vmem %s5, %s1577
          // Predicated region
          $region45: #{residual_forward.1} parent=43 // pred_check
            %p1579 = pneg %p1576
          $region46: #{residual_forward.1} parent=43 // pred_check_branch
            %1581 = sbr.rel (%p1579) target = $region48
          $region47: #{residual_forward.1} parent=43 // pred_region
            // Predicated region
            $region49: #{residual_forward.1} parent=47 // pred_check
              _
            $region50: #{residual_forward.1} parent=47 // pred_check_branch
              %1583 = sbr.rel (0) target = $region52
            $region51: #{residual_forward.1} parent=47 // pred_region
              // Predicated region
              $region71: #{residual_forward.1} parent=51 // pred_check
                _
              $region72: #{residual_forward.1} parent=51 // pred_check_branch
                %1694 = sbr.rel (0) target = $region74
              $region73: #{residual_forward.1} parent=51 // pred_region
                %s1695 = sshrl.u32 %s1574, 5
                // While loop
                $region75: #{residual_forward.1} parent=73 // loop_pre_header
                  _
                $region76: #{residual_forward.1} parent=73 // loop_header
                  %s1697 = sphi 0, %s1699
                  %p1698 = scmp.ge.s32.totalorder %s1697, %s1695
                  %s1702 = sphi 0, %s1771
                  %s1703 = sphi %s1567, %s1774
                  %s1704 = sphi %s1578, %s1775
                $region77: #{residual_forward.1} parent=73 // loop_header_branch
                  %1701 = sbr.rel (%p1698) target = $region81
                $region78: #{residual_forward.1} parent=73 // loop_body
                  %v1705 = vld [vmem:[%s1703] sm:$0xff]
                  %1706 = vst [vmem:[%s1704] sm:$0xff] %v1705
                  %v1707 = vld [vmem:[%s1703 + $0x8] sm:$0xff]
                  %1708 = vst [vmem:[%s1704 + $0x8] sm:$0xff] %v1707
                  %v1709 = vld [vmem:[%s1703 + $0x10] sm:$0xff]
                  %1710 = vst [vmem:[%s1704 + $0x10] sm:$0xff] %v1709
                  %v1711 = vld [vmem:[%s1703 + $0x18] sm:$0xff]
                  %1712 = vst [vmem:[%s1704 + $0x18] sm:$0xff] %v1711
                  %v1713 = vld [vmem:[%s1703 + $0x20] sm:$0xff]
                  %1714 = vst [vmem:[%s1704 + $0x20] sm:$0xff] %v1713
                  %v1715 = vld [vmem:[%s1703 + $0x28] sm:$0xff]
                  %1716 = vst [vmem:[%s1704 + $0x28] sm:$0xff] %v1715
                  %v1717 = vld [vmem:[%s1703 + $0x30] sm:$0xff]
                  %1718 = vst [vmem:[%s1704 + $0x30] sm:$0xff] %v1717
                  %v1719 = vld [vmem:[%s1703 + $0x38] sm:$0xff]
                  %1720 = vst [vmem:[%s1704 + $0x38] sm:$0xff] %v1719
                  %v1721 = vld [vmem:[%s1703 + $0x40] sm:$0xff]
                  %1722 = vst [vmem:[%s1704 + $0x40] sm:$0xff] %v1721
                  %v1723 = vld [vmem:[%s1703 + $0x48] sm:$0xff]
                  %1724 = vst [vmem:[%s1704 + $0x48] sm:$0xff] %v1723
                  %v1725 = vld [vmem:[%s1703 + $0x50] sm:$0xff]
                  %1726 = vst [vmem:[%s1704 + $0x50] sm:$0xff] %v1725
                  %v1727 = vld [vmem:[%s1703 + $0x58] sm:$0xff]
                  %1728 = vst [vmem:[%s1704 + $0x58] sm:$0xff] %v1727
                  %v1729 = vld [vmem:[%s1703 + $0x60] sm:$0xff]
                  %1730 = vst [vmem:[%s1704 + $0x60] sm:$0xff] %v1729
                  %v1731 = vld [vmem:[%s1703 + $0x68] sm:$0xff]
                  %1732 = vst [vmem:[%s1704 + $0x68] sm:$0xff] %v1731
                  %v1733 = vld [vmem:[%s1703 + $0x70] sm:$0xff]
                  %1734 = vst [vmem:[%s1704 + $0x70] sm:$0xff] %v1733
                  %v1735 = vld [vmem:[%s1703 + $0x78] sm:$0xff]
                  %1736 = vst [vmem:[%s1704 + $0x78] sm:$0xff] %v1735
                  %v1737 = vld [vmem:[%s1703 + $0x80] sm:$0xff]
                  %1738 = vst [vmem:[%s1704 + $0x80] sm:$0xff] %v1737
                  %v1739 = vld [vmem:[%s1703 + $0x88] sm:$0xff]
                  %1740 = vst [vmem:[%s1704 + $0x88] sm:$0xff] %v1739
                  %v1741 = vld [vmem:[%s1703 + $0x90] sm:$0xff]
                  %1742 = vst [vmem:[%s1704 + $0x90] sm:$0xff] %v1741
                  %v1743 = vld [vmem:[%s1703 + $0x98] sm:$0xff]
                  %1744 = vst [vmem:[%s1704 + $0x98] sm:$0xff] %v1743
                  %v1745 = vld [vmem:[%s1703 + $0xa0] sm:$0xff]
                  %1746 = vst [vmem:[%s1704 + $0xa0] sm:$0xff] %v1745
                  %v1747 = vld [vmem:[%s1703 + $0xa8] sm:$0xff]
                  %1748 = vst [vmem:[%s1704 + $0xa8] sm:$0xff] %v1747
                  %v1749 = vld [vmem:[%s1703 + $0xb0] sm:$0xff]
                  %1750 = vst [vmem:[%s1704 + $0xb0] sm:$0xff] %v1749
                  %v1751 = vld [vmem:[%s1703 + $0xb8] sm:$0xff]
                  %1752 = vst [vmem:[%s1704 + $0xb8] sm:$0xff] %v1751
                  %v1753 = vld [vmem:[%s1703 + $0xc0] sm:$0xff]
                  %1754 = vst [vmem:[%s1704 + $0xc0] sm:$0xff] %v1753
                  %v1755 = vld [vmem:[%s1703 + $0xc8] sm:$0xff]
                  %1756 = vst [vmem:[%s1704 + $0xc8] sm:$0xff] %v1755
                  %v1757 = vld [vmem:[%s1703 + $0xd0] sm:$0xff]
                  %1758 = vst [vmem:[%s1704 + $0xd0] sm:$0xff] %v1757
                  %v1759 = vld [vmem:[%s1703 + $0xd8] sm:$0xff]
                  %1760 = vst [vmem:[%s1704 + $0xd8] sm:$0xff] %v1759
                  %v1761 = vld [vmem:[%s1703 + $0xe0] sm:$0xff]
                  %1762 = vst [vmem:[%s1704 + $0xe0] sm:$0xff] %v1761
                  %v1763 = vld [vmem:[%s1703 + $0xe8] sm:$0xff]
                  %1764 = vst [vmem:[%s1704 + $0xe8] sm:$0xff] %v1763
                  %v1765 = vld [vmem:[%s1703 + $0xf0] sm:$0xff]
                  %1766 = vst [vmem:[%s1704 + $0xf0] sm:$0xff] %v1765
                  %v1767 = vld [vmem:[%s1703 + $0xf8] sm:$0xff]
                  %1768 = vst [vmem:[%s1704 + $0xf8] sm:$0xff] %v1767
                  %s1769 = sadd.s32 1, %s1702
                  %p1770 = scmp.ge.s32.totalorder %s1769, %s1695
                  %s1771 = scalar_select %p1770, 0, %s1769
                  %s1772 = smul.u32 %s1771, 256
                  %s1773 = smul.u32 %s1771, 256
                  %s1774 = scalar_lea.vmem %s1567, %s1772 [#allocation2]
                  %s1775 = scalar_lea.vmem %s1578, %s1773
                $region79: #{residual_forward.1} parent=73 // loop_footer
                  %s1699 = sadd.s32 %s1697, 1
                $region80: #{residual_forward.1} parent=73 // loop_footer_branch
                  %1696 = sbr.rel target = $region76
                $region81: #{residual_forward.1} parent=73 // loop_exit
                  _
                %s1776 = sshrl.u32 %s1574, 5
                %s1777 = sand.u32 %s1574, 31
                %s1778 = smul.u32 %s1776, 32
                %s1779 = smul.u32 8, %s1778
                %s1780 = scalar_lea.vmem %s1567, %s1779 [#allocation2]
                %s1781 = smul.u32 8, %s1778
                %s1782 = scalar_lea.vmem %s1578, %s1781
                // While loop
                $region82: #{residual_forward.1} parent=73 // loop_pre_header
                  _
                $region83: #{residual_forward.1} parent=73 // loop_header
                  %s1784 = sphi 0, %s1786
                  %p1785 = scmp.ge.s32.totalorder %s1784, %s1777
                  %s1789 = sphi 0, %s1796
                  %s1790 = sphi %s1780, %s1799
                  %s1791 = sphi %s1782, %s1800
                $region84: #{residual_forward.1} parent=73 // loop_header_branch
                  %1788 = sbr.rel (%p1785) target = $region88
                $region85: #{residual_forward.1} parent=73 // loop_body
                  %v1792 = vld [vmem:[%s1790] sm:$0xff]
                  %1793 = vst [vmem:[%s1791] sm:$0xff] %v1792
                  %s1794 = sadd.s32 1, %s1789
                  %p1795 = scmp.ge.s32.totalorder %s1794, %s1777
                  %s1796 = scalar_select %p1795, 0, %s1794
                  %s1797 = smul.u32 %s1796, 8
                  %s1798 = smul.u32 %s1796, 8
                  %s1799 = scalar_lea.vmem %s1780, %s1797 [#allocation2]
                  %s1800 = scalar_lea.vmem %s1782, %s1798
                $region86: #{residual_forward.1} parent=73 // loop_footer
                  %s1786 = sadd.s32 %s1784, 1
                $region87: #{residual_forward.1} parent=73 // loop_footer_branch
                  %1783 = sbr.rel target = $region83
                $region88: #{residual_forward.1} parent=73 // loop_exit
                  _
              $region74: #{residual_forward.1} parent=51 // pred_fallthru
                _
              // Predicated region
              $region89: #{residual_forward.1} parent=51 // pred_check
                _
              $region90: #{residual_forward.1} parent=51 // pred_check_branch
                %1802 = sbr.rel target = $region92
              $region91: #{residual_forward.1} parent=51 // pred_region
                _
              $region92: #{residual_forward.1} parent=51 // pred_fallthru
                _
            $region52: #{residual_forward.1} parent=47 // pred_fallthru
              _
            // Predicated region
            $region53: #{residual_forward.1} parent=47 // pred_check
              _
            $region54: #{residual_forward.1} parent=47 // pred_check_branch
              %1585 = sbr.rel target = $region56
            $region55: #{residual_forward.1} parent=47 // pred_region
              %s1587 = sshrl.u32 %s1574, 5
              // While loop
              $region57: #{residual_forward.1} parent=55 // loop_pre_header
                _
              $region58: #{residual_forward.1} parent=55 // loop_header
                %s1589 = sphi 0, %s1591
                %p1590 = scmp.ge.s32.totalorder %s1589, %s1587
                %s1594 = sphi 0, %s1663
                %s1595 = sphi %s1567, %s1666
                %s1596 = sphi %s1578, %s1667
              $region59: #{residual_forward.1} parent=55 // loop_header_branch
                %1593 = sbr.rel (%p1590) target = $region63
              $region60: #{residual_forward.1} parent=55 // loop_body
                %v1597 = vld [vmem:[%s1595] sm:$0xff]
                %1598 = vst [vmem:[%s1596] sm:$0xff] %v1597
                %v1599 = vld [vmem:[%s1595 + $0x8] sm:$0xff]
                %1600 = vst [vmem:[%s1596 + $0x8] sm:$0xff] %v1599
                %v1601 = vld [vmem:[%s1595 + $0x10] sm:$0xff]
                %1602 = vst [vmem:[%s1596 + $0x10] sm:$0xff] %v1601
                %v1603 = vld [vmem:[%s1595 + $0x18] sm:$0xff]
                %1604 = vst [vmem:[%s1596 + $0x18] sm:$0xff] %v1603
                %v1605 = vld [vmem:[%s1595 + $0x20] sm:$0xff]
                %1606 = vst [vmem:[%s1596 + $0x20] sm:$0xff] %v1605
                %v1607 = vld [vmem:[%s1595 + $0x28] sm:$0xff]
                %1608 = vst [vmem:[%s1596 + $0x28] sm:$0xff] %v1607
                %v1609 = vld [vmem:[%s1595 + $0x30] sm:$0xff]
                %1610 = vst [vmem:[%s1596 + $0x30] sm:$0xff] %v1609
                %v1611 = vld [vmem:[%s1595 + $0x38] sm:$0xff]
                %1612 = vst [vmem:[%s1596 + $0x38] sm:$0xff] %v1611
                %v1613 = vld [vmem:[%s1595 + $0x40] sm:$0xff]
                %1614 = vst [vmem:[%s1596 + $0x40] sm:$0xff] %v1613
                %v1615 = vld [vmem:[%s1595 + $0x48] sm:$0xff]
                %1616 = vst [vmem:[%s1596 + $0x48] sm:$0xff] %v1615
                %v1617 = vld [vmem:[%s1595 + $0x50] sm:$0xff]
                %1618 = vst [vmem:[%s1596 + $0x50] sm:$0xff] %v1617
                %v1619 = vld [vmem:[%s1595 + $0x58] sm:$0xff]
                %1620 = vst [vmem:[%s1596 + $0x58] sm:$0xff] %v1619
                %v1621 = vld [vmem:[%s1595 + $0x60] sm:$0xff]
                %1622 = vst [vmem:[%s1596 + $0x60] sm:$0xff] %v1621
                %v1623 = vld [vmem:[%s1595 + $0x68] sm:$0xff]
                %1624 = vst [vmem:[%s1596 + $0x68] sm:$0xff] %v1623
                %v1625 = vld [vmem:[%s1595 + $0x70] sm:$0xff]
                %1626 = vst [vmem:[%s1596 + $0x70] sm:$0xff] %v1625
                %v1627 = vld [vmem:[%s1595 + $0x78] sm:$0xff]
                %1628 = vst [vmem:[%s1596 + $0x78] sm:$0xff] %v1627
                %v1629 = vld [vmem:[%s1595 + $0x80] sm:$0xff]
                %1630 = vst [vmem:[%s1596 + $0x80] sm:$0xff] %v1629
                %v1631 = vld [vmem:[%s1595 + $0x88] sm:$0xff]
                %1632 = vst [vmem:[%s1596 + $0x88] sm:$0xff] %v1631
                %v1633 = vld [vmem:[%s1595 + $0x90] sm:$0xff]
                %1634 = vst [vmem:[%s1596 + $0x90] sm:$0xff] %v1633
                %v1635 = vld [vmem:[%s1595 + $0x98] sm:$0xff]
                %1636 = vst [vmem:[%s1596 + $0x98] sm:$0xff] %v1635
                %v1637 = vld [vmem:[%s1595 + $0xa0] sm:$0xff]
                %1638 = vst [vmem:[%s1596 + $0xa0] sm:$0xff] %v1637
                %v1639 = vld [vmem:[%s1595 + $0xa8] sm:$0xff]
                %1640 = vst [vmem:[%s1596 + $0xa8] sm:$0xff] %v1639
                %v1641 = vld [vmem:[%s1595 + $0xb0] sm:$0xff]
                %1642 = vst [vmem:[%s1596 + $0xb0] sm:$0xff] %v1641
                %v1643 = vld [vmem:[%s1595 + $0xb8] sm:$0xff]
                %1644 = vst [vmem:[%s1596 + $0xb8] sm:$0xff] %v1643
                %v1645 = vld [vmem:[%s1595 + $0xc0] sm:$0xff]
                %1646 = vst [vmem:[%s1596 + $0xc0] sm:$0xff] %v1645
                %v1647 = vld [vmem:[%s1595 + $0xc8] sm:$0xff]
                %1648 = vst [vmem:[%s1596 + $0xc8] sm:$0xff] %v1647
                %v1649 = vld [vmem:[%s1595 + $0xd0] sm:$0xff]
                %1650 = vst [vmem:[%s1596 + $0xd0] sm:$0xff] %v1649
                %v1651 = vld [vmem:[%s1595 + $0xd8] sm:$0xff]
                %1652 = vst [vmem:[%s1596 + $0xd8] sm:$0xff] %v1651
                %v1653 = vld [vmem:[%s1595 + $0xe0] sm:$0xff]
                %1654 = vst [vmem:[%s1596 + $0xe0] sm:$0xff] %v1653
                %v1655 = vld [vmem:[%s1595 + $0xe8] sm:$0xff]
                %1656 = vst [vmem:[%s1596 + $0xe8] sm:$0xff] %v1655
                %v1657 = vld [vmem:[%s1595 + $0xf0] sm:$0xff]
                %1658 = vst [vmem:[%s1596 + $0xf0] sm:$0xff] %v1657
                %v1659 = vld [vmem:[%s1595 + $0xf8] sm:$0xff]
                %1660 = vst [vmem:[%s1596 + $0xf8] sm:$0xff] %v1659
                %s1661 = sadd.s32 1, %s1594
                %p1662 = scmp.ge.s32.totalorder %s1661, %s1587
                %s1663 = scalar_select %p1662, 0, %s1661
                %s1664 = smul.u32 %s1663, 256
                %s1665 = smul.u32 %s1663, 256
                %s1666 = scalar_lea.vmem %s1567, %s1664 [#allocation2]
                %s1667 = scalar_lea.vmem %s1578, %s1665
              $region61: #{residual_forward.1} parent=55 // loop_footer
                %s1591 = sadd.s32 %s1589, 1
              $region62: #{residual_forward.1} parent=55 // loop_footer_branch
                %1588 = sbr.rel target = $region58
              $region63: #{residual_forward.1} parent=55 // loop_exit
                _
              %s1668 = sshrl.u32 %s1574, 5
              %s1669 = sand.u32 %s1574, 31
              %s1670 = smul.u32 %s1668, 32
              %s1671 = smul.u32 8, %s1670
              %s1672 = scalar_lea.vmem %s1567, %s1671 [#allocation2]
              %s1673 = smul.u32 8, %s1670
              %s1674 = scalar_lea.vmem %s1578, %s1673
              // While loop
              $region64: #{residual_forward.1} parent=55 // loop_pre_header
                _
              $region65: #{residual_forward.1} parent=55 // loop_header
                %s1676 = sphi 0, %s1678
                %p1677 = scmp.ge.s32.totalorder %s1676, %s1669
                %s1681 = sphi 0, %s1688
                %s1682 = sphi %s1672, %s1691
                %s1683 = sphi %s1674, %s1692
              $region66: #{residual_forward.1} parent=55 // loop_header_branch
                %1680 = sbr.rel (%p1677) target = $region70
              $region67: #{residual_forward.1} parent=55 // loop_body
                %v1684 = vld [vmem:[%s1682] sm:$0xff]
                %1685 = vst [vmem:[%s1683] sm:$0xff] %v1684
                %s1686 = sadd.s32 1, %s1681
                %p1687 = scmp.ge.s32.totalorder %s1686, %s1669
                %s1688 = scalar_select %p1687, 0, %s1686
                %s1689 = smul.u32 %s1688, 8
                %s1690 = smul.u32 %s1688, 8
                %s1691 = scalar_lea.vmem %s1672, %s1689 [#allocation2]
                %s1692 = scalar_lea.vmem %s1674, %s1690
              $region68: #{residual_forward.1} parent=55 // loop_footer
                %s1678 = sadd.s32 %s1676, 1
              $region69: #{residual_forward.1} parent=55 // loop_footer_branch
                %1675 = sbr.rel target = $region65
              $region70: #{residual_forward.1} parent=55 // loop_exit
                _
            $region56: #{residual_forward.1} parent=47 // pred_fallthru
              _
          $region48: #{residual_forward.1} parent=43 // pred_fallthru
            _
          %1803 = vnop
        $region44: #{residual_forward.1} parent=39 // pred_fallthru
          _
      $region40: #{residual_forward.1} parent=5 // pred_fallthru
        _
      %p1804 = scmp.le.s32.totalorder 2, %s11
      // Predicated region
      $region93: #{residual_forward.1} parent=5 // pred_check
        %p1805 = pneg %p1804
      $region94: #{residual_forward.1} parent=5 // pred_check_branch
        %1807 = sbr.rel (%p1805) target = $region96
      $region95: #{residual_forward.1} parent=5 // pred_region
        %s1808 = ssub.s32 %s11, 2
        // Predicated region
        $region97: #{residual_forward.1} parent=95 // pred_check
          %p1809 = pneg %p150
        $region98: #{residual_forward.1} parent=95 // pred_check_branch
          %1811 = sbr.rel (%p1809) target = $region100
        $region99: #{residual_forward.1} parent=95 // pred_region
          %s1812 = sand.u32 %s135, 1
          %s1813 = sand.u32 %s135, 1
          %s1814 = smul.addr %s1813, 256
          %s1815 = scalar_lea.vmem [#allocation2], %s1814
        $region100: #{residual_forward.1} parent=95 // pred_fallthru
          _
      $region96: #{residual_forward.1} parent=5 // pred_fallthru
        _
    $region6: #{residual_forward.1} parent=1 // loop_footer
      %s15 = sadd.s32 1, %s11
    $region7: #{residual_forward.1} parent=1 // loop_footer_branch
      %10 = sbr.rel target = $region3
    $region8: #{residual_forward.1} parent=1 // loop_exit
      _

</llo_original>
